<compile_context>
chip_gen: v7x
topology: tpu7x:2x2x1
jax: 0.10.0
libtpu: 0.0.40
codegen_flags: <defaults>
</compile_context>

<pallas_src>
import functools

import jax
import jax.numpy as jnp
from jax import lax
from jax.experimental import pallas as pl
from jax.experimental.pallas import tpu as pltpu


def _cdiv(a, b):
    return -(-a // b)


def _round_up(x, m):
    return ((x + m - 1) // m) * m


def _lipswish(x):
    # LipSwish: 0.909 * silu(x) = 0.909 * x * sigmoid(x)
    return 0.909 * x * jax.nn.sigmoid(x)


def _mlp_kernel(*refs, n_linear, transpose_out, precision):
    # refs = (h, w0h^T, b0_eff, w1^T, b1, ..., wL^T, bL, out)
    # Weights are pre-transposed to (out, in); biases are (out, 1) columns.
    # Activations live as (features, block_b): batch on the 128-lane axis.
    h_ref = refs[0]
    out_ref = refs[-1]
    pr = refs[1:-1]

    # First linear with the [t, h] concat pre-folded into b0_eff:
    #   x = W0[1:, :]^T @ h^T + b0_eff      (contraction over `hidden` on both)
    x = lax.dot_general(
        pr[0][...], h_ref[...],
        dimension_numbers=(((1,), (1,)), ((), ())),
        precision=precision,
        preferred_element_type=jnp.float32,
    )
    x = _lipswish(x + pr[1][...])

    # Remaining linears (LipSwish after all but the last), then tanh.
    for li in range(1, n_linear):
        w = pr[2 * li][...]
        b = pr[2 * li + 1][...]
        xin = x.astype(w.dtype)          # bf16 feed in bf16 mode, no-op in f32
        x = jnp.dot(w, xin, precision=precision,
                    preferred_element_type=jnp.float32) + b
        if li < n_linear - 1:
            x = _lipswish(x)
    x = jnp.tanh(x)

    if transpose_out:
        x = x.T                          # (block_b, out_size), lane-dense store
    out_ref[...] = x.astype(out_ref.dtype)


def discriminator_func_forward(t, h, params, *, data_size, hidden_size,
                               block_b=None):
    """Pallas implementation of DiscriminatorFunc.forward(t, h).

    t: scalar (0-d) float
    h: (B, hidden_size), float32 or bfloat16 (bf16 => bf16 streaming)
    params: list of (W, b) with W shaped (in, out), b shaped (out,)
            (i.e. x @ W + b == PyTorch Linear with W = weight.T)
    returns: (B, hidden_size, 1 + data_size) in h.dtype
    """
    B, hid = h.shape
    assert hid == hidden_size
    out_size = hidden_size * (1 + data_size)
    n_linear = len(params)
    assert n_linear >= 2

    out_dtype = h.dtype
    stream_dtype = jnp.bfloat16 if h.dtype == jnp.bfloat16 else jnp.float32
    # Strict f32 accumulation when streaming f32 (avoid bf16-pass MXU lowering).
    precision = lax.Precision.HIGHEST if stream_dtype == jnp.float32 else None
    f32 = jnp.float32

    # --- fold t into the first-layer bias; transpose weights to (out, in) ---
    w0, b0 = params[0]
    w0 = jnp.asarray(w0, f32)                                     # (1+hid, mlp)
    b0_eff = (jnp.asarray(b0, f32)
              + jnp.asarray(t, f32) * w0[0, :]).reshape(-1, 1)    # (mlp, 1) f32
    flat = [w0[1:, :].T.astype(stream_dtype), b0_eff]             # (mlp, hid)
    for (w, b) in params[1:]:
        flat.append(jnp.asarray(w, f32).T.astype(stream_dtype))   # (out, in)
        flat.append(jnp.asarray(b, f32).reshape(-1, 1))           # (out, 1) f32

    h_in = h.astype(stream_dtype)

    # --- batch tiling: big tiles, but >=2 grid steps once batch >= 256 -------
    n128 = _cdiv(B, 128)
    if block_b is None:
        g = max(_cdiv(n128, 32), min(n128, 2))    # target <=4096 cols, >=2 steps
        block_b = _cdiv(n128, g) * 128
    else:
        block_b = max(128, _round_up(block_b, 128))

    # --- VMEM re-budget (v7x has only 64 MiB physical VMEM) ------------------
    in_elt = jnp.dtype(stream_dtype).itemsize
    out_elt = jnp.dtype(out_dtype).itemsize
    widest = max(int(w.shape[0]) for w in flat[0::2])
    param_bytes = sum(int(p.size) * jnp.dtype(p.dtype).itemsize for p in flat)

    def vmem_est(bb):
        io = 2 * bb * (hidden_size * in_elt + out_size * out_elt)  # dbl-buffered
        tmp = 4 * bb * widest * 4                                  # f32 temps
        return io + tmp + 2 * param_bytes

    VMEM_BUDGET = 40 * 1024 * 1024
    while block_b > 128 and vmem_est(block_b) > VMEM_BUDGET:
        block_b -= 128
    vmem_limit_bytes = int(min(48 * 2 ** 20,
                               max(32 * 2 ** 20, int(1.25 * vmem_est(block_b)))))

    grid = (_cdiv(B, block_b),)
    transpose_out = out_size >= 128

    # --- specs ---------------------------------------------------------------
    in_specs = (
        [pl.BlockSpec((block_b, hidden_size), lambda i: (i, 0))]      # h tile
        + [pl.BlockSpec(p.shape, lambda i: (0, 0)) for p in flat]     # params
    )
    if transpose_out:
        out_specs = pl.BlockSpec((block_b, out_size), lambda i: (i, 0))
        out_shape = jax.ShapeDtypeStruct((B, out_size), out_dtype)
    else:
        out_specs = pl.BlockSpec((out_size, block_b), lambda i: (0, i))
        out_shape = jax.ShapeDtypeStruct((out_size, B), out_dtype)

    # Advisory cost estimate for the XLA scheduler.
    flops = 2 * B * sum(int(w.shape[0]) * int(w.shape[1]) for (w, _) in params)
    transc = B * (sum(int(w.shape[1]) for (w, _) in params[:-1]) + out_size)
    bytes_acc = (B * hidden_size * in_elt + B * out_size * out_elt
                 + param_bytes)

    kernel = functools.partial(_mlp_kernel, n_linear=n_linear,
                               transpose_out=transpose_out, precision=precision)

    out_arr = pl.pallas_call(
        kernel,
        out_shape=out_shape,
        grid_spec=pltpu.PrefetchScalarGridSpec(
            num_scalar_prefetch=0,
            grid=grid,
            in_specs=in_specs,
            out_specs=out_specs,
        ),
        compiler_params=pltpu.CompilerParams(
            dimension_semantics=("parallel",),
            vmem_limit_bytes=vmem_limit_bytes,
        ),
        cost_estimate=pl.CostEstimate(
            flops=flops, transcendentals=transc, bytes_accessed=bytes_acc),
    )(h_in, *flat)

    # Glue: .view(B, hidden, 1 + data_size).  Only the tiny out_size<128 path
    # pays a post-kernel transpose.
    out = out_arr if transpose_out else out_arr.T
    return out.reshape(B, hidden_size, 1 + data_size)


def init_params(key, data_size, hidden_size, mlp_size, num_layers):
    """Deterministic synthetic parameters matching the module's shapes."""
    in_size = 1 + hidden_size
    out_size = hidden_size * (1 + data_size)
    dims = [in_size] + [mlp_size] * num_layers + [out_size]
    params = []
    for li in range(len(dims) - 1):
        key, kw, kb = jax.random.split(key, 3)
        bound = 1.0 / float(jnp.sqrt(dims[li]))
        w = jax.random.uniform(kw, (dims[li], dims[li + 1]),
                               minval=-bound, maxval=bound, dtype=jnp.float32)
        b = jax.random.uniform(kb, (dims[li + 1],),
                               minval=-bound, maxval=bound, dtype=jnp.float32)
        params.append((w, b))
    return params


def _reference_forward(t, h, params, *, data_size, hidden_size):
    """Plain-JAX f32 reference mirroring the PyTorch module."""
    B = h.shape[0]
    t_col = jnp.full((B, 1), t, dtype=h.dtype)
    x = jnp.concatenate([t_col, h], axis=1)
    n_linear = len(params)
    for li, (w, b) in enumerate(params):
        x = jnp.dot(x, w, precision=lax.Precision.HIGHEST) + b
        if li < n_linear - 1:
            x = _lipswish(x)
    return jnp.tanh(x).reshape(B, hidden_size, 1 + data_size)


if __name__ == "__main__":
    def run_case(name, key, data_size, hidden_size, mlp_size, num_layers,
                 batch, dtype, atol):
        kp, kh, kt = jax.random.split(key, 3)
        params = init_params(kp, data_size, hidden_size, mlp_size, num_layers)
        h = jax.random.normal(kh, (batch, hidden_size), dtype=jnp.float32)
        t = jax.random.uniform(kt, (), dtype=jnp.float32)

        out = discriminator_func_forward(
            t, h.astype(dtype), params,
            data_size=data_size, hidden_size=hidden_size)
        out = jax.block_until_ready(out)

        ref = _reference_forward(t, h, params,
                                 data_size=data_size, hidden_size=hidden_size)
        assert out.shape == (batch, hidden_size, 1 + data_size), (name, out.shape)
        err = float(jnp.max(jnp.abs(out.astype(jnp.float32) - ref)))
        assert err < atol, (name, err)

    key = jax.random.PRNGKey(0)
    k1, k2, k3 = jax.random.split(key, 3)

    # 1) small config: out_size=40 < 128 (lane-dense (out, B) store path),
    #    ragged batch (B=8 < block of 128) exercising masked boundary stores.
    run_case("small", k1, data_size=4, hidden_size=8, mlp_size=32,
             num_layers=2, batch=8, dtype=jnp.float32, atol=2e-5)

    # 2) wide config: out_size=128 -> in-kernel transpose + lane-dense
    #    (B, out_size) store; 2 grid steps with a ragged last tile (B=200).
    run_case("wide", k2, data_size=3, hidden_size=32, mlp_size=64,
             num_layers=2, batch=200, dtype=jnp.float32, atol=2e-5)

    # 3) same wide config streamed in bf16 (f32 accumulation inside).
    run_case("bf16", k3, data_size=3, hidden_size=32, mlp_size=64,
             num_layers=2, batch=200, dtype=jnp.bfloat16, atol=1.5e-1)

    print("KERNEL_OK")
</pallas_src>

<mosaic_0001>
module attributes {stable_mosaic.version = 11 : i64} {
  func.func @_mlp_kernel(%arg0: i32, %arg1: memref<128x8xf32, #tpu.memory_space<vmem>>, %arg2: memref<32x8xf32, #tpu.memory_space<vmem>>, %arg3: memref<32x1xf32, #tpu.memory_space<vmem>>, %arg4: memref<32x32xf32, #tpu.memory_space<vmem>>, %arg5: memref<32x1xf32, #tpu.memory_space<vmem>>, %arg6: memref<40x32xf32, #tpu.memory_space<vmem>>, %arg7: memref<40x1xf32, #tpu.memory_space<vmem>>, %arg8: memref<40x128xf32, #tpu.memory_space<vmem>>) attributes {dimension_semantics = [#tpu.dimension_semantics<parallel>], iteration_bounds = array<i64: 1>, scalar_prefetch = 0 : i64, scratch_operands = 0 : i64, tpu.core_type = #tpu.core_type<tc>, window_params = [{transform_indices = @transform_0, window_bounds = array<i64: 128, 8>}, {pipeline_mode = #tpu.pipeline_mode<synchronous>, transform_indices = @transform_1, window_bounds = array<i64: 32, 8>}, {pipeline_mode = #tpu.pipeline_mode<synchronous>, transform_indices = @transform_2, window_bounds = array<i64: 32, 1>}, {pipeline_mode = #tpu.pipeline_mode<synchronous>, transform_indices = @transform_3, window_bounds = array<i64: 32, 32>}, {pipeline_mode = #tpu.pipeline_mode<synchronous>, transform_indices = @transform_4, window_bounds = array<i64: 32, 1>}, {pipeline_mode = #tpu.pipeline_mode<synchronous>, transform_indices = @transform_5, window_bounds = array<i64: 40, 32>}, {pipeline_mode = #tpu.pipeline_mode<synchronous>, transform_indices = @transform_6, window_bounds = array<i64: 40, 1>}, {transform_indices = @transform_7, window_bounds = array<i64: 40, 128>}]} {
    %c0 = arith.constant 0 : index
    %c0_0 = arith.constant 0 : index
    %0 = vector.load %arg2[%c0, %c0_0] : memref<32x8xf32, #tpu.memory_space<vmem>>, vector<32x8xf32>
    %c0_1 = arith.constant 0 : index
    %c0_2 = arith.constant 0 : index
    %1 = vector.load %arg1[%c0_1, %c0_2] : memref<128x8xf32, #tpu.memory_space<vmem>>, vector<128x8xf32>
    %cst = arith.constant dense<0.000000e+00> : vector<32x128xf32>
    %2 = tpu.matmul %0, %1, %cst {dimension_numbers = #tpu.dot_dimension_numbers<[1], [1], [0], [0], [0, 0, 1, 0], [], []>, precision = #tpu.contract_precision<fp32>} : vector<32x8xf32>, vector<128x8xf32>, vector<32x128xf32> -> vector<32x128xf32>
    %c0_3 = arith.constant 0 : index
    %c0_4 = arith.constant 0 : index
    %3 = vector.load %arg3[%c0_3, %c0_4] : memref<32x1xf32, #tpu.memory_space<vmem>>, vector<32x1xf32>
    %4 = vector.broadcast %3 : vector<32x1xf32> to vector<32x128xf32>
    %5 = arith.addf %2, %4 : vector<32x128xf32>
    %cst_5 = arith.constant 0.908999979 : f32
    %6 = vector.broadcast %cst_5 : f32 to vector<32x128xf32>
    %7 = arith.mulf %6, %5 : vector<32x128xf32>
    %8 = arith.negf %5 : vector<32x128xf32>
    %9 = math.exp %8 : vector<32x128xf32>
    %cst_6 = arith.constant 1.000000e+00 : f32
    %10 = vector.broadcast %cst_6 : f32 to vector<32x128xf32>
    %11 = arith.addf %10, %9 : vector<32x128xf32>
    %12 = arith.divf %10, %11 : vector<32x128xf32>
    %13 = arith.mulf %7, %12 : vector<32x128xf32>
    %c0_7 = arith.constant 0 : index
    %c0_8 = arith.constant 0 : index
    %14 = vector.load %arg4[%c0_7, %c0_8] : memref<32x32xf32, #tpu.memory_space<vmem>>, vector<32x32xf32>
    %c0_9 = arith.constant 0 : index
    %c0_10 = arith.constant 0 : index
    %15 = vector.load %arg5[%c0_9, %c0_10] : memref<32x1xf32, #tpu.memory_space<vmem>>, vector<32x1xf32>
    %cst_11 = arith.constant dense<0.000000e+00> : vector<32x128xf32>
    %16 = tpu.matmul %14, %13, %cst_11 {dimension_numbers = #tpu.dot_dimension_numbers<[1], [0], [0], [1], [0, 0, 1, 1], [], []>, precision = #tpu.contract_precision<fp32>} : vector<32x32xf32>, vector<32x128xf32>, vector<32x128xf32> -> vector<32x128xf32>
    %17 = vector.broadcast %15 : vector<32x1xf32> to vector<32x128xf32>
    %18 = arith.addf %16, %17 : vector<32x128xf32>
    %cst_12 = arith.constant 0.908999979 : f32
    %19 = vector.broadcast %cst_12 : f32 to vector<32x128xf32>
    %20 = arith.mulf %19, %18 : vector<32x128xf32>
    %21 = arith.negf %18 : vector<32x128xf32>
    %22 = math.exp %21 : vector<32x128xf32>
    %cst_13 = arith.constant 1.000000e+00 : f32
    %23 = vector.broadcast %cst_13 : f32 to vector<32x128xf32>
    %24 = arith.addf %23, %22 : vector<32x128xf32>
    %25 = arith.divf %23, %24 : vector<32x128xf32>
    %26 = arith.mulf %20, %25 : vector<32x128xf32>
    %c0_14 = arith.constant 0 : index
    %c0_15 = arith.constant 0 : index
    %27 = vector.load %arg6[%c0_14, %c0_15] : memref<40x32xf32, #tpu.memory_space<vmem>>, vector<40x32xf32>
    %c0_16 = arith.constant 0 : index
    %c0_17 = arith.constant 0 : index
    %28 = vector.load %arg7[%c0_16, %c0_17] : memref<40x1xf32, #tpu.memory_space<vmem>>, vector<40x1xf32>
    %cst_18 = arith.constant dense<0.000000e+00> : vector<40x128xf32>
    %29 = tpu.matmul %27, %26, %cst_18 {dimension_numbers = #tpu.dot_dimension_numbers<[1], [0], [0], [1], [0, 0, 1, 1], [], []>, precision = #tpu.contract_precision<fp32>} : vector<40x32xf32>, vector<32x128xf32>, vector<40x128xf32> -> vector<40x128xf32>
    %30 = vector.broadcast %28 : vector<40x1xf32> to vector<40x128xf32>
    %31 = arith.addf %29, %30 : vector<40x128xf32>
    %32 = math.tanh %31 : vector<40x128xf32>
    %c0_19 = arith.constant 0 : index
    %c0_20 = arith.constant 0 : index
    %33 = vector.load %arg8[%c0_19, %c0_20] : memref<40x128xf32, #tpu.memory_space<vmem>>, vector<40x128xf32>
    tpu.vector_store %arg8[%c0_19, %c0_20], %32 {strides = array<i32>} : memref<40x128xf32, #tpu.memory_space<vmem>>, vector<40x128xf32>,
    return
  }
  func.func @transform_0(%arg0: i32) -> (i32, i32) {
    %c0_i32 = arith.constant 0 : i32
    %c0_i32_0 = arith.constant 0 : i32
    return %arg0, %c0_i32 : i32, i32
  }
  func.func @transform_1(%arg0: i32) -> (i32, i32) {
    %c0_i32 = arith.constant 0 : i32
    %c0_i32_0 = arith.constant 0 : i32
    %c0_i32_1 = arith.constant 0 : i32
    return %c0_i32, %c0_i32_0 : i32, i32
  }
  func.func @transform_2(%arg0: i32) -> (i32, i32) {
    %c0_i32 = arith.constant 0 : i32
    %c0_i32_0 = arith.constant 0 : i32
    %c0_i32_1 = arith.constant 0 : i32
    return %c0_i32, %c0_i32_0 : i32, i32
  }
  func.func @transform_3(%arg0: i32) -> (i32, i32) {
    %c0_i32 = arith.constant 0 : i32
    %c0_i32_0 = arith.constant 0 : i32
    %c0_i32_1 = arith.constant 0 : i32
    return %c0_i32, %c0_i32_0 : i32, i32
  }
  func.func @transform_4(%arg0: i32) -> (i32, i32) {
    %c0_i32 = arith.constant 0 : i32
    %c0_i32_0 = arith.constant 0 : i32
    %c0_i32_1 = arith.constant 0 : i32
    return %c0_i32, %c0_i32_0 : i32, i32
  }
  func.func @transform_5(%arg0: i32) -> (i32, i32) {
    %c0_i32 = arith.constant 0 : i32
    %c0_i32_0 = arith.constant 0 : i32
    %c0_i32_1 = arith.constant 0 : i32
    return %c0_i32, %c0_i32_0 : i32, i32
  }
  func.func @transform_6(%arg0: i32) -> (i32, i32) {
    %c0_i32 = arith.constant 0 : i32
    %c0_i32_0 = arith.constant 0 : i32
    %c0_i32_1 = arith.constant 0 : i32
    return %c0_i32, %c0_i32_0 : i32, i32
  }
  func.func @transform_7(%arg0: i32) -> (i32, i32) {
    %c0_i32 = arith.constant 0 : i32
    %c0_i32_0 = arith.constant 0 : i32
    return %c0_i32, %arg0 : i32, i32
  }
}

</mosaic_0001>

<llo_original>
// kernel: tpu_custom_call.1
$region0: #{tpu_custom_call.1}
  #allocation0 [shape = 'u32[]', space=smem, size = 0x4, offset = 0x4, fixed_abs, tag = 'smem constant byte address 0x4 - core index']
  #allocation1 [shape = 'u32[144,128]{1,0:T(1,128)}', space=vmem, size = 0x12000, scoped, tag = 'internal scratch']
  %s0 = inlined_call_operand.vmem [shape: f32[8,8], index: 0, kind: input, shape index: {}]
  %s1 = inlined_call_operand.vmem [shape: f32[32,8], index: 1, kind: input, shape index: {}]
  %s2 = inlined_call_operand.vmem [shape: f32[32,1], index: 2, kind: input, shape index: {}]
  %s3 = inlined_call_operand.vmem [shape: f32[32,32], index: 3, kind: input, shape index: {}]
  %s4 = inlined_call_operand.vmem [shape: f32[32,1], index: 4, kind: input, shape index: {}]
  %s5 = inlined_call_operand.vmem [shape: f32[40,32], index: 5, kind: input, shape index: {}]
  %s6 = inlined_call_operand.vmem [shape: f32[40,1], index: 6, kind: input, shape index: {}]
  %s7 = inlined_call_operand.vmem [shape: f32[40,8], index: 7, kind: output, shape index: {}]
  %s8 = sld [smem:[#allocation0]]
  $region38: #{tpu_custom_call.1} parent=0
    _
  %s10 = ssub.s32 1, %s8
  %s11 = scalar_select 0, %s10, %s8
  // Predicated region
  $region2: #{tpu_custom_call.1} parent=0 // pred_check
    _
  $region3: #{tpu_custom_call.1} parent=0 // pred_check_branch
    %13 = sbr.rel (0) target = $region5
  $region4: #{tpu_custom_call.1} parent=0 // pred_region
    _
  $region5: #{tpu_custom_call.1} parent=0 // pred_fallthru
    _
  // Predicated region
  $region6: #{tpu_custom_call.1} parent=0 // pred_check
    _
  $region7: #{tpu_custom_call.1} parent=0 // pred_check_branch
    %15 = sbr.rel (0) target = $region9
  $region8: #{tpu_custom_call.1} parent=0 // pred_region
    _
  $region9: #{tpu_custom_call.1} parent=0 // pred_fallthru
    _
  // Predicated region
  $region10: #{tpu_custom_call.1} parent=0 // pred_check
    _
  $region11: #{tpu_custom_call.1} parent=0 // pred_check_branch
    %17 = sbr.rel (0) target = $region13
  $region12: #{tpu_custom_call.1} parent=0 // pred_region
    _
  $region13: #{tpu_custom_call.1} parent=0 // pred_fallthru
    _
  // Predicated region
  $region14: #{tpu_custom_call.1} parent=0 // pred_check
    _
  $region15: #{tpu_custom_call.1} parent=0 // pred_check_branch
    %19 = sbr.rel (0) target = $region17
  $region16: #{tpu_custom_call.1} parent=0 // pred_region
    _
  $region17: #{tpu_custom_call.1} parent=0 // pred_fallthru
    _
  // Predicated region
  $region18: #{tpu_custom_call.1} parent=0 // pred_check
    _
  $region19: #{tpu_custom_call.1} parent=0 // pred_check_branch
    %21 = sbr.rel (0) target = $region21
  $region20: #{tpu_custom_call.1} parent=0 // pred_region
    _
  $region21: #{tpu_custom_call.1} parent=0 // pred_fallthru
    _
  // Predicated region
  $region22: #{tpu_custom_call.1} parent=0 // pred_check
    _
  $region23: #{tpu_custom_call.1} parent=0 // pred_check_branch
    %23 = sbr.rel (0) target = $region25
  $region24: #{tpu_custom_call.1} parent=0 // pred_region
    _
  $region25: #{tpu_custom_call.1} parent=0 // pred_fallthru
    _
  // Predicated region
  $region26: #{tpu_custom_call.1} parent=0 // pred_check
    _
  $region27: #{tpu_custom_call.1} parent=0 // pred_check_branch
    %25 = sbr.rel (0) target = $region29
  $region28: #{tpu_custom_call.1} parent=0 // pred_region
    _
  $region29: #{tpu_custom_call.1} parent=0 // pred_fallthru
    _
  %v26 = vld [vmem:[%s1] sm:$0xff]
  %v27 = vld [vmem:[%s1 + $0x8] sm:$0xff]
  %v28 = vld [vmem:[%s1 + $0x10] sm:$0xff]
  %v29 = vld [vmem:[%s1 + $0x18] sm:$0xff]
  %v30 = vld [vmem:[%s0] sm:$0xff]
  %v31 = vld [vmem:[%s0 + $0x8] sm:$0xff]
  %v32 = vld [vmem:[%s0 + $0x10] sm:$0xff]
  %v33 = vld [vmem:[%s0 + $0x18] sm:$0xff]
  %v34 = vld [vmem:[%s0 + $0x20] sm:$0xff]
  %v35 = vld [vmem:[%s0 + $0x28] sm:$0xff]
  %v36 = vld [vmem:[%s0 + $0x30] sm:$0xff]
  %v37 = vld [vmem:[%s0 + $0x38] sm:$0xff]
  %v38 = vld [vmem:[%s0 + $0x40] sm:$0xff]
  %v39 = vld [vmem:[%s0 + $0x48] sm:$0xff]
  %v40 = vld [vmem:[%s0 + $0x50] sm:$0xff]
  %v41 = vld [vmem:[%s0 + $0x58] sm:$0xff]
  %v42 = vld [vmem:[%s0 + $0x60] sm:$0xff]
  %v43 = vld [vmem:[%s0 + $0x68] sm:$0xff]
  %v44 = vld [vmem:[%s0 + $0x70] sm:$0xff]
  %v45 = vld [vmem:[%s0 + $0x78] sm:$0xff]
  %v46 = vld [vmem:[%s2] sm:$0xff]
  %v47 = vld [vmem:[%s2 + $0x8] sm:$0xff]
  %v48 = vld [vmem:[%s2 + $0x10] sm:$0xff]
  %v49 = vld [vmem:[%s2 + $0x18] sm:$0xff]
  %51 = vset.pattern.permute.xlu0 0
  %52 = vperm.xlu0 %51, %v46
  %v53 = vpop.permute.xlu0 %52
  %56 = vset.pattern.permute.xlu0 0
  %57 = vperm.xlu0 %56, %v47
  %v58 = vpop.permute.xlu0 %57
  %61 = vset.pattern.permute.xlu0 0
  %62 = vperm.xlu0 %61, %v48
  %v63 = vpop.permute.xlu0 %62
  %66 = vset.pattern.permute.xlu0 0
  %67 = vperm.xlu0 %66, %v49
  %v68 = vpop.permute.xlu0 %67
  %vm70 = vcmask 64512
  %v72 = vsel %vm70, %v26, 0
  %v75 = vsel %vm70, %v27, 0
  %v78 = vsel %vm70, %v28, 0
  %v81 = vsel %vm70, %v29, 0
  %v84 = vsel %vm70, %v30, 0
  %v87 = vsel %vm70, %v31, 0
  %v90 = vsel %vm70, %v32, 0
  %v93 = vsel %vm70, %v33, 0
  %v96 = vsel %vm70, %v34, 0
  %v99 = vsel %vm70, %v35, 0
  %v102 = vsel %vm70, %v36, 0
  %v105 = vsel %vm70, %v37, 0
  %v108 = vsel %vm70, %v38, 0
  %v111 = vsel %vm70, %v39, 0
  %v114 = vsel %vm70, %v40, 0
  %v117 = vsel %vm70, %v41, 0
  %v120 = vsel %vm70, %v42, 0
  %v123 = vsel %vm70, %v43, 0
  %v126 = vsel %vm70, %v44, 0
  %v129 = vsel %vm70, %v45, 0
  %131 = vmatprep.subr.mxu0 0.0
  %v132 = vand.u32 %v84, 4294901760
  %133 = vmatpush1.xpose.msra.mxu0 %v132
  %134 = vmatprep.subr.mxu0 0.0
  %v135 = vand.u32 %v87, 4294901760
  %136 = vmatpush1.xpose.msra.mxu0 %v135
  %137 = vmatprep.subr.mxu0 0.0
  %v138 = vand.u32 %v90, 4294901760
  %139 = vmatpush1.xpose.msra.mxu0 %v138
  %140 = vmatprep.subr.mxu0 0.0
  %v141 = vand.u32 %v93, 4294901760
  %142 = vmatpush1.xpose.msra.mxu0 %v141
  %143 = vmatprep.subr.mxu0 0.0
  %v144 = vand.u32 %v96, 4294901760
  %145 = vmatpush1.xpose.msra.mxu0 %v144
  %146 = vmatprep.subr.mxu0 0.0
  %v147 = vand.u32 %v99, 4294901760
  %148 = vmatpush1.xpose.msra.mxu0 %v147
  %149 = vmatprep.subr.mxu0 0.0
  %v150 = vand.u32 %v102, 4294901760
  %151 = vmatpush1.xpose.msra.mxu0 %v150
  %152 = vmatprep.subr.mxu0 0.0
  %v153 = vand.u32 %v105, 4294901760
  %154 = vmatpush1.xpose.msra.mxu0 %v153
  %155 = vmatprep.subr.mxu0 0.0
  %v156 = vand.u32 %v108, 4294901760
  %157 = vmatpush1.xpose.msra.mxu0 %v156
  %158 = vmatprep.subr.mxu0 0.0
  %v159 = vand.u32 %v111, 4294901760
  %160 = vmatpush1.xpose.msra.mxu0 %v159
  %161 = vmatprep.subr.mxu0 0.0
  %v162 = vand.u32 %v114, 4294901760
  %163 = vmatpush1.xpose.msra.mxu0 %v162
  %164 = vmatprep.subr.mxu0 0.0
  %v165 = vand.u32 %v117, 4294901760
  %166 = vmatpush1.xpose.msra.mxu0 %v165
  %167 = vmatprep.subr.mxu0 0.0
  %v168 = vand.u32 %v120, 4294901760
  %169 = vmatpush1.xpose.msra.mxu0 %v168
  %170 = vmatprep.subr.mxu0 0.0
  %v171 = vand.u32 %v123, 4294901760
  %172 = vmatpush1.xpose.msra.mxu0 %v171
  %173 = vmatprep.subr.mxu0 0.0
  %v174 = vand.u32 %v126, 4294901760
  %175 = vmatpush1.xpose.msra.mxu0 %v174
  %176 = vmatprep.subr.mxu0 0.0
  %v177 = vand.u32 %v129, 4294901760
  %178 = vmatpush1.xpose.msra.mxu0 %v177
  %179 = vmatprep.subr.mxu0 0.0
  %180 = vmatpush1.xpose.msra.mxu0 0.0
  %181 = vmatprep.subr.mxu0 0.0
  %182 = vmatpush1.xpose.msra.mxu0 0.0
  %183 = vmatprep.subr.mxu0 0.0
  %184 = vmatpush1.xpose.msra.mxu0 0.0
  %185 = vmatprep.subr.mxu0 0.0
  %186 = vmatpush1.xpose.msra.mxu0 0.0
  %187 = vmatprep.subr.mxu0 0.0
  %188 = vmatpush1.xpose.msra.mxu0 0.0
  %189 = vmatprep.subr.mxu0 0.0
  %190 = vmatpush1.xpose.msra.mxu0 0.0
  %191 = vmatprep.subr.mxu0 0.0
  %192 = vmatpush1.xpose.msra.mxu0 0.0
  %193 = vmatprep.subr.mxu0 0.0
  %194 = vmatpush1.xpose.msra.mxu0 0.0
  %195 = vmatprep.subr.mxu0 0.0
  %196 = vmatpush1.xpose.msra.mxu0 0.0
  %197 = vmatprep.subr.mxu0 0.0
  %198 = vmatpush1.xpose.msra.mxu0 0.0
  %199 = vmatprep.subr.mxu0 0.0
  %200 = vmatpush1.xpose.msra.mxu0 0.0
  %201 = vmatprep.subr.mxu0 0.0
  %202 = vmatpush1.xpose.msra.mxu0 0.0
  %203 = vmatprep.subr.mxu0 0.0
  %204 = vmatpush1.xpose.msra.mxu0 0.0
  %205 = vmatprep.subr.mxu0 0.0
  %206 = vmatpush1.xpose.msra.mxu0 0.0
  %207 = vmatprep.subr.mxu0 0.0
  %208 = vmatpush1.xpose.msra.mxu0 0.0
  %209 = vmatprep.subr.mxu0 0.0
  %210 = vmatpush1.xpose.msra.mxu0 0.0
  %211 = vmatprep.mubr.f32.mxu0 0.0
  %v212 = vand.u32 %v72, 4294901760
  %v213 = vsub.f32 %v72, %v212
  %v214 = vand.u32 %v213, 4294901760
  %v215 = vsub.f32 %v213, %v214
  %v216 = vand.u32 %v215, 4294901760
  %217 = vmatmul.mubr.f32.gmra.mrb[0].mxu0 %v216
  %v218 = vpop.f32.mrb[0].mxu0
  %v219 = vadd.f32 %v53, %v218
  %v220 = vpop.f32.mrb[0].mxu0
  %221 = vmatprep.mubr.f32.mxu0 0.0
  %v222 = vand.u32 %v75, 4294901760
  %v223 = vsub.f32 %v75, %v222
  %v224 = vand.u32 %v223, 4294901760
  %v225 = vsub.f32 %v223, %v224
  %v226 = vand.u32 %v225, 4294901760
  %227 = vmatmul.mubr.f32.gmra.mrb[0].mxu0 %v226
  %v228 = vpop.f32.mrb[0].mxu0
  %v229 = vadd.f32 %v58, %v228
  %v230 = vpop.f32.mrb[0].mxu0
  %231 = vmatprep.mubr.f32.mxu0 0.0
  %v232 = vand.u32 %v78, 4294901760
  %v233 = vsub.f32 %v78, %v232
  %v234 = vand.u32 %v233, 4294901760
  %v235 = vsub.f32 %v233, %v234
  %v236 = vand.u32 %v235, 4294901760
  %237 = vmatmul.mubr.f32.gmra.mrb[0].mxu0 %v236
  %v238 = vpop.f32.mrb[0].mxu0
  %v239 = vadd.f32 %v63, %v238
  %v240 = vpop.f32.mrb[0].mxu0
  %241 = vmatprep.mubr.f32.mxu0 0.0
  %v242 = vand.u32 %v81, 4294901760
  %v243 = vsub.f32 %v81, %v242
  %v244 = vand.u32 %v243, 4294901760
  %v245 = vsub.f32 %v243, %v244
  %v246 = vand.u32 %v245, 4294901760
  %247 = vmatmul.mubr.f32.gmra.mrb[0].mxu0 %v246
  %v248 = vpop.f32.mrb[0].mxu0
  %v249 = vadd.f32 %v68, %v248
  %v250 = vpop.f32.mrb[0].mxu0
  %251 = vdwg.mxu0
  %252 = vmatprep.subr.mxu0 0.0
  %v253 = vand.u32 %v84, 4294901760
  %v254 = vsub.f32 %v84, %v253
  %v255 = vand.u32 %v254, 4294901760
  %v256 = vsub.f32 %v254, %v255
  %v257 = vand.u32 %v256, 4294901760
  %258 = vmatpush1.xpose.msra.mxu0 %v257
  %259 = vmatprep.subr.mxu0 0.0
  %v260 = vand.u32 %v87, 4294901760
  %v261 = vsub.f32 %v87, %v260
  %v262 = vand.u32 %v261, 4294901760
  %v263 = vsub.f32 %v261, %v262
  %v264 = vand.u32 %v263, 4294901760
  %265 = vmatpush1.xpose.msra.mxu0 %v264
  %266 = vmatprep.subr.mxu0 0.0
  %v267 = vand.u32 %v90, 4294901760
  %v268 = vsub.f32 %v90, %v267
  %v269 = vand.u32 %v268, 4294901760
  %v270 = vsub.f32 %v268, %v269
  %v271 = vand.u32 %v270, 4294901760
  %272 = vmatpush1.xpose.msra.mxu0 %v271
  %273 = vmatprep.subr.mxu0 0.0
  %v274 = vand.u32 %v93, 4294901760
  %v275 = vsub.f32 %v93, %v274
  %v276 = vand.u32 %v275, 4294901760
  %v277 = vsub.f32 %v275, %v276
  %v278 = vand.u32 %v277, 4294901760
  %279 = vmatpush1.xpose.msra.mxu0 %v278
  %280 = vmatprep.subr.mxu0 0.0
  %v281 = vand.u32 %v96, 4294901760
  %v282 = vsub.f32 %v96, %v281
  %v283 = vand.u32 %v282, 4294901760
  %v284 = vsub.f32 %v282, %v283
  %v285 = vand.u32 %v284, 4294901760
  %286 = vmatpush1.xpose.msra.mxu0 %v285
  %287 = vmatprep.subr.mxu0 0.0
  %v288 = vand.u32 %v99, 4294901760
  %v289 = vsub.f32 %v99, %v288
  %v290 = vand.u32 %v289, 4294901760
  %v291 = vsub.f32 %v289, %v290
  %v292 = vand.u32 %v291, 4294901760
  %293 = vmatpush1.xpose.msra.mxu0 %v292
  %294 = vmatprep.subr.mxu0 0.0
  %v295 = vand.u32 %v102, 4294901760
  %v296 = vsub.f32 %v102, %v295
  %v297 = vand.u32 %v296, 4294901760
  %v298 = vsub.f32 %v296, %v297
  %v299 = vand.u32 %v298, 4294901760
  %300 = vmatpush1.xpose.msra.mxu0 %v299
  %301 = vmatprep.subr.mxu0 0.0
  %v302 = vand.u32 %v105, 4294901760
  %v303 = vsub.f32 %v105, %v302
  %v304 = vand.u32 %v303, 4294901760
  %v305 = vsub.f32 %v303, %v304
  %v306 = vand.u32 %v305, 4294901760
  %307 = vmatpush1.xpose.msra.mxu0 %v306
  %308 = vmatprep.subr.mxu0 0.0
  %v309 = vand.u32 %v108, 4294901760
  %v310 = vsub.f32 %v108, %v309
  %v311 = vand.u32 %v310, 4294901760
  %v312 = vsub.f32 %v310, %v311
  %v313 = vand.u32 %v312, 4294901760
  %314 = vmatpush1.xpose.msra.mxu0 %v313
  %315 = vmatprep.subr.mxu0 0.0
  %v316 = vand.u32 %v111, 4294901760
  %v317 = vsub.f32 %v111, %v316
  %v318 = vand.u32 %v317, 4294901760
  %v319 = vsub.f32 %v317, %v318
  %v320 = vand.u32 %v319, 4294901760
  %321 = vmatpush1.xpose.msra.mxu0 %v320
  %322 = vmatprep.subr.mxu0 0.0
  %v323 = vand.u32 %v114, 4294901760
  %v324 = vsub.f32 %v114, %v323
  %v325 = vand.u32 %v324, 4294901760
  %v326 = vsub.f32 %v324, %v325
  %v327 = vand.u32 %v326, 4294901760
  %328 = vmatpush1.xpose.msra.mxu0 %v327
  %329 = vmatprep.subr.mxu0 0.0
  %v330 = vand.u32 %v117, 4294901760
  %v331 = vsub.f32 %v117, %v330
  %v332 = vand.u32 %v331, 4294901760
  %v333 = vsub.f32 %v331, %v332
  %v334 = vand.u32 %v333, 4294901760
  %335 = vmatpush1.xpose.msra.mxu0 %v334
  %336 = vmatprep.subr.mxu0 0.0
  %v337 = vand.u32 %v120, 4294901760
  %v338 = vsub.f32 %v120, %v337
  %v339 = vand.u32 %v338, 4294901760
  %v340 = vsub.f32 %v338, %v339
  %v341 = vand.u32 %v340, 4294901760
  %342 = vmatpush1.xpose.msra.mxu0 %v341
  %343 = vmatprep.subr.mxu0 0.0
  %v344 = vand.u32 %v123, 4294901760
  %v345 = vsub.f32 %v123, %v344
  %v346 = vand.u32 %v345, 4294901760
  %v347 = vsub.f32 %v345, %v346
  %v348 = vand.u32 %v347, 4294901760
  %349 = vmatpush1.xpose.msra.mxu0 %v348
  %350 = vmatprep.subr.mxu0 0.0
  %v351 = vand.u32 %v126, 4294901760
  %v352 = vsub.f32 %v126, %v351
  %v353 = vand.u32 %v352, 4294901760
  %v354 = vsub.f32 %v352, %v353
  %v355 = vand.u32 %v354, 4294901760
  %356 = vmatpush1.xpose.msra.mxu0 %v355
  %357 = vmatprep.subr.mxu0 0.0
  %v358 = vand.u32 %v129, 4294901760
  %v359 = vsub.f32 %v129, %v358
  %v360 = vand.u32 %v359, 4294901760
  %v361 = vsub.f32 %v359, %v360
  %v362 = vand.u32 %v361, 4294901760
  %363 = vmatpush1.xpose.msra.mxu0 %v362
  %364 = vmatprep.subr.mxu0 0.0
  %365 = vmatpush1.xpose.msra.mxu0 0.0
  %366 = vmatprep.subr.mxu0 0.0
  %367 = vmatpush1.xpose.msra.mxu0 0.0
  %368 = vmatprep.subr.mxu0 0.0
  %369 = vmatpush1.xpose.msra.mxu0 0.0
  %370 = vmatprep.subr.mxu0 0.0
  %371 = vmatpush1.xpose.msra.mxu0 0.0
  %372 = vmatprep.subr.mxu0 0.0
  %373 = vmatpush1.xpose.msra.mxu0 0.0
  %374 = vmatprep.subr.mxu0 0.0
  %375 = vmatpush1.xpose.msra.mxu0 0.0
  %376 = vmatprep.subr.mxu0 0.0
  %377 = vmatpush1.xpose.msra.mxu0 0.0
  %378 = vmatprep.subr.mxu0 0.0
  %379 = vmatpush1.xpose.msra.mxu0 0.0
  %380 = vmatprep.subr.mxu0 0.0
  %381 = vmatpush1.xpose.msra.mxu0 0.0
  %382 = vmatprep.subr.mxu0 0.0
  %383 = vmatpush1.xpose.msra.mxu0 0.0
  %384 = vmatprep.subr.mxu0 0.0
  %385 = vmatpush1.xpose.msra.mxu0 0.0
  %386 = vmatprep.subr.mxu0 0.0
  %387 = vmatpush1.xpose.msra.mxu0 0.0
  %388 = vmatprep.subr.mxu0 0.0
  %389 = vmatpush1.xpose.msra.mxu0 0.0
  %390 = vmatprep.subr.mxu0 0.0
  %391 = vmatpush1.xpose.msra.mxu0 0.0
  %392 = vmatprep.subr.mxu0 0.0
  %393 = vmatpush1.xpose.msra.mxu0 0.0
  %394 = vmatprep.subr.mxu0 0.0
  %395 = vmatpush1.xpose.msra.mxu0 0.0
  %396 = vmatprep.mubr.f32.mxu0 0.0
  %v397 = vand.u32 %v72, 4294901760
  %398 = vmatmul.mubr.f32.gmra.mrb[0].mxu0 %v397
  %v399 = vpop.f32.mrb[0].mxu0
  %v400 = vadd.f32 %v219, %v399
  %v401 = vpop.f32.mrb[0].mxu0
  %402 = vmatprep.mubr.f32.mxu0 0.0
  %v403 = vand.u32 %v75, 4294901760
  %404 = vmatmul.mubr.f32.gmra.mrb[0].mxu0 %v403
  %v405 = vpop.f32.mrb[0].mxu0
  %v406 = vadd.f32 %v229, %v405
  %v407 = vpop.f32.mrb[0].mxu0
  %408 = vmatprep.mubr.f32.mxu0 0.0
  %v409 = vand.u32 %v78, 4294901760
  %410 = vmatmul.mubr.f32.gmra.mrb[0].mxu0 %v409
  %v411 = vpop.f32.mrb[0].mxu0
  %v412 = vadd.f32 %v239, %v411
  %v413 = vpop.f32.mrb[0].mxu0
  %414 = vmatprep.mubr.f32.mxu0 0.0
  %v415 = vand.u32 %v81, 4294901760
  %416 = vmatmul.mubr.f32.gmra.mrb[0].mxu0 %v415
  %v417 = vpop.f32.mrb[0].mxu0
  %v418 = vadd.f32 %v249, %v417
  %v419 = vpop.f32.mrb[0].mxu0
  %420 = vdwg.mxu0
  %421 = vmatprep.subr.mxu0 0.0
  %v422 = vand.u32 %v84, 4294901760
  %v423 = vsub.f32 %v84, %v422
  %424 = vmatpush1.xpose.msra.mxu0 %v423
  %425 = vmatprep.subr.mxu0 0.0
  %v426 = vand.u32 %v87, 4294901760
  %v427 = vsub.f32 %v87, %v426
  %428 = vmatpush1.xpose.msra.mxu0 %v427
  %429 = vmatprep.subr.mxu0 0.0
  %v430 = vand.u32 %v90, 4294901760
  %v431 = vsub.f32 %v90, %v430
  %432 = vmatpush1.xpose.msra.mxu0 %v431
  %433 = vmatprep.subr.mxu0 0.0
  %v434 = vand.u32 %v93, 4294901760
  %v435 = vsub.f32 %v93, %v434
  %436 = vmatpush1.xpose.msra.mxu0 %v435
  %437 = vmatprep.subr.mxu0 0.0
  %v438 = vand.u32 %v96, 4294901760
  %v439 = vsub.f32 %v96, %v438
  %440 = vmatpush1.xpose.msra.mxu0 %v439
  %441 = vmatprep.subr.mxu0 0.0
  %v442 = vand.u32 %v99, 4294901760
  %v443 = vsub.f32 %v99, %v442
  %444 = vmatpush1.xpose.msra.mxu0 %v443
  %445 = vmatprep.subr.mxu0 0.0
  %v446 = vand.u32 %v102, 4294901760
  %v447 = vsub.f32 %v102, %v446
  %448 = vmatpush1.xpose.msra.mxu0 %v447
  %449 = vmatprep.subr.mxu0 0.0
  %v450 = vand.u32 %v105, 4294901760
  %v451 = vsub.f32 %v105, %v450
  %452 = vmatpush1.xpose.msra.mxu0 %v451
  %453 = vmatprep.subr.mxu0 0.0
  %v454 = vand.u32 %v108, 4294901760
  %v455 = vsub.f32 %v108, %v454
  %456 = vmatpush1.xpose.msra.mxu0 %v455
  %457 = vmatprep.subr.mxu0 0.0
  %v458 = vand.u32 %v111, 4294901760
  %v459 = vsub.f32 %v111, %v458
  %460 = vmatpush1.xpose.msra.mxu0 %v459
  %461 = vmatprep.subr.mxu0 0.0
  %v462 = vand.u32 %v114, 4294901760
  %v463 = vsub.f32 %v114, %v462
  %464 = vmatpush1.xpose.msra.mxu0 %v463
  %465 = vmatprep.subr.mxu0 0.0
  %v466 = vand.u32 %v117, 4294901760
  %v467 = vsub.f32 %v117, %v466
  %468 = vmatpush1.xpose.msra.mxu0 %v467
  %469 = vmatprep.subr.mxu0 0.0
  %v470 = vand.u32 %v120, 4294901760
  %v471 = vsub.f32 %v120, %v470
  %472 = vmatpush1.xpose.msra.mxu0 %v471
  %473 = vmatprep.subr.mxu0 0.0
  %v474 = vand.u32 %v123, 4294901760
  %v475 = vsub.f32 %v123, %v474
  %476 = vmatpush1.xpose.msra.mxu0 %v475
  %477 = vmatprep.subr.mxu0 0.0
  %v478 = vand.u32 %v126, 4294901760
  %v479 = vsub.f32 %v126, %v478
  %480 = vmatpush1.xpose.msra.mxu0 %v479
  %481 = vmatprep.subr.mxu0 0.0
  %v482 = vand.u32 %v129, 4294901760
  %v483 = vsub.f32 %v129, %v482
  %484 = vmatpush1.xpose.msra.mxu0 %v483
  %485 = vmatprep.subr.mxu0 0.0
  %486 = vmatpush1.xpose.msra.mxu0 0.0
  %487 = vmatprep.subr.mxu0 0.0
  %488 = vmatpush1.xpose.msra.mxu0 0.0
  %489 = vmatprep.subr.mxu0 0.0
  %490 = vmatpush1.xpose.msra.mxu0 0.0
  %491 = vmatprep.subr.mxu0 0.0
  %492 = vmatpush1.xpose.msra.mxu0 0.0
  %493 = vmatprep.subr.mxu0 0.0
  %494 = vmatpush1.xpose.msra.mxu0 0.0
  %495 = vmatprep.subr.mxu0 0.0
  %496 = vmatpush1.xpose.msra.mxu0 0.0
  %497 = vmatprep.subr.mxu0 0.0
  %498 = vmatpush1.xpose.msra.mxu0 0.0
  %499 = vmatprep.subr.mxu0 0.0
  %500 = vmatpush1.xpose.msra.mxu0 0.0
  %501 = vmatprep.subr.mxu0 0.0
  %502 = vmatpush1.xpose.msra.mxu0 0.0
  %503 = vmatprep.subr.mxu0 0.0
  %504 = vmatpush1.xpose.msra.mxu0 0.0
  %505 = vmatprep.subr.mxu0 0.0
  %506 = vmatpush1.xpose.msra.mxu0 0.0
  %507 = vmatprep.subr.mxu0 0.0
  %508 = vmatpush1.xpose.msra.mxu0 0.0
  %509 = vmatprep.subr.mxu0 0.0
  %510 = vmatpush1.xpose.msra.mxu0 0.0
  %511 = vmatprep.subr.mxu0 0.0
  %512 = vmatpush1.xpose.msra.mxu0 0.0
  %513 = vmatprep.subr.mxu0 0.0
  %514 = vmatpush1.xpose.msra.mxu0 0.0
  %515 = vmatprep.subr.mxu0 0.0
  %516 = vmatpush1.xpose.msra.mxu0 0.0
  %517 = vmatprep.mubr.f32.mxu0 0.0
  %v518 = vand.u32 %v72, 4294901760
  %v519 = vsub.f32 %v72, %v518
  %520 = vmatmul.mubr.f32.gmra.mrb[0].mxu0 %v519
  %v521 = vpop.f32.mrb[0].mxu0
  %v522 = vadd.f32 %v400, %v521
  %v523 = vpop.f32.mrb[0].mxu0
  %524 = vmatprep.mubr.f32.mxu0 0.0
  %v525 = vand.u32 %v75, 4294901760
  %v526 = vsub.f32 %v75, %v525
  %527 = vmatmul.mubr.f32.gmra.mrb[0].mxu0 %v526
  %v528 = vpop.f32.mrb[0].mxu0
  %v529 = vadd.f32 %v406, %v528
  %v530 = vpop.f32.mrb[0].mxu0
  %531 = vmatprep.mubr.f32.mxu0 0.0
  %v532 = vand.u32 %v78, 4294901760
  %v533 = vsub.f32 %v78, %v532
  %534 = vmatmul.mubr.f32.gmra.mrb[0].mxu0 %v533
  %v535 = vpop.f32.mrb[0].mxu0
  %v536 = vadd.f32 %v412, %v535
  %v537 = vpop.f32.mrb[0].mxu0
  %538 = vmatprep.mubr.f32.mxu0 0.0
  %v539 = vand.u32 %v81, 4294901760
  %v540 = vsub.f32 %v81, %v539
  %541 = vmatmul.mubr.f32.gmra.mrb[0].mxu0 %v540
  %v542 = vpop.f32.mrb[0].mxu0
  %v543 = vadd.f32 %v418, %v542
  %v544 = vpop.f32.mrb[0].mxu0
  %545 = vdwg.mxu0
  %546 = vmatprep.subr.mxu0 0.0
  %v547 = vand.u32 %v84, 4294901760
  %548 = vmatpush1.xpose.msra.mxu0 %v547
  %549 = vmatprep.subr.mxu0 0.0
  %v550 = vand.u32 %v87, 4294901760
  %551 = vmatpush1.xpose.msra.mxu0 %v550
  %552 = vmatprep.subr.mxu0 0.0
  %v553 = vand.u32 %v90, 4294901760
  %554 = vmatpush1.xpose.msra.mxu0 %v553
  %555 = vmatprep.subr.mxu0 0.0
  %v556 = vand.u32 %v93, 4294901760
  %557 = vmatpush1.xpose.msra.mxu0 %v556
  %558 = vmatprep.subr.mxu0 0.0
  %v559 = vand.u32 %v96, 4294901760
  %560 = vmatpush1.xpose.msra.mxu0 %v559
  %561 = vmatprep.subr.mxu0 0.0
  %v562 = vand.u32 %v99, 4294901760
  %563 = vmatpush1.xpose.msra.mxu0 %v562
  %564 = vmatprep.subr.mxu0 0.0
  %v565 = vand.u32 %v102, 4294901760
  %566 = vmatpush1.xpose.msra.mxu0 %v565
  %567 = vmatprep.subr.mxu0 0.0
  %v568 = vand.u32 %v105, 4294901760
  %569 = vmatpush1.xpose.msra.mxu0 %v568
  %570 = vmatprep.subr.mxu0 0.0
  %v571 = vand.u32 %v108, 4294901760
  %572 = vmatpush1.xpose.msra.mxu0 %v571
  %573 = vmatprep.subr.mxu0 0.0
  %v574 = vand.u32 %v111, 4294901760
  %575 = vmatpush1.xpose.msra.mxu0 %v574
  %576 = vmatprep.subr.mxu0 0.0
  %v577 = vand.u32 %v114, 4294901760
  %578 = vmatpush1.xpose.msra.mxu0 %v577
  %579 = vmatprep.subr.mxu0 0.0
  %v580 = vand.u32 %v117, 4294901760
  %581 = vmatpush1.xpose.msra.mxu0 %v580
  %582 = vmatprep.subr.mxu0 0.0
  %v583 = vand.u32 %v120, 4294901760
  %584 = vmatpush1.xpose.msra.mxu0 %v583
  %585 = vmatprep.subr.mxu0 0.0
  %v586 = vand.u32 %v123, 4294901760
  %587 = vmatpush1.xpose.msra.mxu0 %v586
  %588 = vmatprep.subr.mxu0 0.0
  %v589 = vand.u32 %v126, 4294901760
  %590 = vmatpush1.xpose.msra.mxu0 %v589
  %591 = vmatprep.subr.mxu0 0.0
  %v592 = vand.u32 %v129, 4294901760
  %593 = vmatpush1.xpose.msra.mxu0 %v592
  %594 = vmatprep.subr.mxu0 0.0
  %595 = vmatpush1.xpose.msra.mxu0 0.0
  %596 = vmatprep.subr.mxu0 0.0
  %597 = vmatpush1.xpose.msra.mxu0 0.0
  %598 = vmatprep.subr.mxu0 0.0
  %599 = vmatpush1.xpose.msra.mxu0 0.0
  %600 = vmatprep.subr.mxu0 0.0
  %601 = vmatpush1.xpose.msra.mxu0 0.0
  %602 = vmatprep.subr.mxu0 0.0
  %603 = vmatpush1.xpose.msra.mxu0 0.0
  %604 = vmatprep.subr.mxu0 0.0
  %605 = vmatpush1.xpose.msra.mxu0 0.0
  %606 = vmatprep.subr.mxu0 0.0
  %607 = vmatpush1.xpose.msra.mxu0 0.0
  %608 = vmatprep.subr.mxu0 0.0
  %609 = vmatpush1.xpose.msra.mxu0 0.0
  %610 = vmatprep.subr.mxu0 0.0
  %611 = vmatpush1.xpose.msra.mxu0 0.0
  %612 = vmatprep.subr.mxu0 0.0
  %613 = vmatpush1.xpose.msra.mxu0 0.0
  %614 = vmatprep.subr.mxu0 0.0
  %615 = vmatpush1.xpose.msra.mxu0 0.0
  %616 = vmatprep.subr.mxu0 0.0
  %617 = vmatpush1.xpose.msra.mxu0 0.0
  %618 = vmatprep.subr.mxu0 0.0
  %619 = vmatpush1.xpose.msra.mxu0 0.0
  %620 = vmatprep.subr.mxu0 0.0
  %621 = vmatpush1.xpose.msra.mxu0 0.0
  %622 = vmatprep.subr.mxu0 0.0
  %623 = vmatpush1.xpose.msra.mxu0 0.0
  %624 = vmatprep.subr.mxu0 0.0
  %625 = vmatpush1.xpose.msra.mxu0 0.0
  %626 = vmatprep.mubr.f32.mxu0 0.0
  %v627 = vand.u32 %v72, 4294901760
  %v628 = vsub.f32 %v72, %v627
  %v629 = vand.u32 %v628, 4294901760
  %630 = vmatmul.mubr.f32.gmra.mrb[0].mxu0 %v629
  %v631 = vpop.f32.mrb[0].mxu0
  %v632 = vadd.f32 %v522, %v631
  %v633 = vpop.f32.mrb[0].mxu0
  %634 = vmatprep.mubr.f32.mxu0 0.0
  %v635 = vand.u32 %v75, 4294901760
  %v636 = vsub.f32 %v75, %v635
  %v637 = vand.u32 %v636, 4294901760
  %638 = vmatmul.mubr.f32.gmra.mrb[0].mxu0 %v637
  %v639 = vpop.f32.mrb[0].mxu0
  %v640 = vadd.f32 %v529, %v639
  %v641 = vpop.f32.mrb[0].mxu0
  %642 = vmatprep.mubr.f32.mxu0 0.0
  %v643 = vand.u32 %v78, 4294901760
  %v644 = vsub.f32 %v78, %v643
  %v645 = vand.u32 %v644, 4294901760
  %646 = vmatmul.mubr.f32.gmra.mrb[0].mxu0 %v645
  %v647 = vpop.f32.mrb[0].mxu0
  %v648 = vadd.f32 %v536, %v647
  %v649 = vpop.f32.mrb[0].mxu0
  %650 = vmatprep.mubr.f32.mxu0 0.0
  %v651 = vand.u32 %v81, 4294901760
  %v652 = vsub.f32 %v81, %v651
  %v653 = vand.u32 %v652, 4294901760
  %654 = vmatmul.mubr.f32.gmra.mrb[0].mxu0 %v653
  %v655 = vpop.f32.mrb[0].mxu0
  %v656 = vadd.f32 %v543, %v655
  %v657 = vpop.f32.mrb[0].mxu0
  %658 = vdwg.mxu0
  %659 = vmatprep.subr.mxu0 0.0
  %v660 = vand.u32 %v84, 4294901760
  %v661 = vsub.f32 %v84, %v660
  %v662 = vand.u32 %v661, 4294901760
  %663 = vmatpush1.xpose.msra.mxu0 %v662
  %664 = vmatprep.subr.mxu0 0.0
  %v665 = vand.u32 %v87, 4294901760
  %v666 = vsub.f32 %v87, %v665
  %v667 = vand.u32 %v666, 4294901760
  %668 = vmatpush1.xpose.msra.mxu0 %v667
  %669 = vmatprep.subr.mxu0 0.0
  %v670 = vand.u32 %v90, 4294901760
  %v671 = vsub.f32 %v90, %v670
  %v672 = vand.u32 %v671, 4294901760
  %673 = vmatpush1.xpose.msra.mxu0 %v672
  %674 = vmatprep.subr.mxu0 0.0
  %v675 = vand.u32 %v93, 4294901760
  %v676 = vsub.f32 %v93, %v675
  %v677 = vand.u32 %v676, 4294901760
  %678 = vmatpush1.xpose.msra.mxu0 %v677
  %679 = vmatprep.subr.mxu0 0.0
  %v680 = vand.u32 %v96, 4294901760
  %v681 = vsub.f32 %v96, %v680
  %v682 = vand.u32 %v681, 4294901760
  %683 = vmatpush1.xpose.msra.mxu0 %v682
  %684 = vmatprep.subr.mxu0 0.0
  %v685 = vand.u32 %v99, 4294901760
  %v686 = vsub.f32 %v99, %v685
  %v687 = vand.u32 %v686, 4294901760
  %688 = vmatpush1.xpose.msra.mxu0 %v687
  %689 = vmatprep.subr.mxu0 0.0
  %v690 = vand.u32 %v102, 4294901760
  %v691 = vsub.f32 %v102, %v690
  %v692 = vand.u32 %v691, 4294901760
  %693 = vmatpush1.xpose.msra.mxu0 %v692
  %694 = vmatprep.subr.mxu0 0.0
  %v695 = vand.u32 %v105, 4294901760
  %v696 = vsub.f32 %v105, %v695
  %v697 = vand.u32 %v696, 4294901760
  %698 = vmatpush1.xpose.msra.mxu0 %v697
  %699 = vmatprep.subr.mxu0 0.0
  %v700 = vand.u32 %v108, 4294901760
  %v701 = vsub.f32 %v108, %v700
  %v702 = vand.u32 %v701, 4294901760
  %703 = vmatpush1.xpose.msra.mxu0 %v702
  %704 = vmatprep.subr.mxu0 0.0
  %v705 = vand.u32 %v111, 4294901760
  %v706 = vsub.f32 %v111, %v705
  %v707 = vand.u32 %v706, 4294901760
  %708 = vmatpush1.xpose.msra.mxu0 %v707
  %709 = vmatprep.subr.mxu0 0.0
  %v710 = vand.u32 %v114, 4294901760
  %v711 = vsub.f32 %v114, %v710
  %v712 = vand.u32 %v711, 4294901760
  %713 = vmatpush1.xpose.msra.mxu0 %v712
  %714 = vmatprep.subr.mxu0 0.0
  %v715 = vand.u32 %v117, 4294901760
  %v716 = vsub.f32 %v117, %v715
  %v717 = vand.u32 %v716, 4294901760
  %718 = vmatpush1.xpose.msra.mxu0 %v717
  %719 = vmatprep.subr.mxu0 0.0
  %v720 = vand.u32 %v120, 4294901760
  %v721 = vsub.f32 %v120, %v720
  %v722 = vand.u32 %v721, 4294901760
  %723 = vmatpush1.xpose.msra.mxu0 %v722
  %724 = vmatprep.subr.mxu0 0.0
  %v725 = vand.u32 %v123, 4294901760
  %v726 = vsub.f32 %v123, %v725
  %v727 = vand.u32 %v726, 4294901760
  %728 = vmatpush1.xpose.msra.mxu0 %v727
  %729 = vmatprep.subr.mxu0 0.0
  %v730 = vand.u32 %v126, 4294901760
  %v731 = vsub.f32 %v126, %v730
  %v732 = vand.u32 %v731, 4294901760
  %733 = vmatpush1.xpose.msra.mxu0 %v732
  %734 = vmatprep.subr.mxu0 0.0
  %v735 = vand.u32 %v129, 4294901760
  %v736 = vsub.f32 %v129, %v735
  %v737 = vand.u32 %v736, 4294901760
  %738 = vmatpush1.xpose.msra.mxu0 %v737
  %739 = vmatprep.subr.mxu0 0.0
  %740 = vmatpush1.xpose.msra.mxu0 0.0
  %741 = vmatprep.subr.mxu0 0.0
  %742 = vmatpush1.xpose.msra.mxu0 0.0
  %743 = vmatprep.subr.mxu0 0.0
  %744 = vmatpush1.xpose.msra.mxu0 0.0
  %745 = vmatprep.subr.mxu0 0.0
  %746 = vmatpush1.xpose.msra.mxu0 0.0
  %747 = vmatprep.subr.mxu0 0.0
  %748 = vmatpush1.xpose.msra.mxu0 0.0
  %749 = vmatprep.subr.mxu0 0.0
  %750 = vmatpush1.xpose.msra.mxu0 0.0
  %751 = vmatprep.subr.mxu0 0.0
  %752 = vmatpush1.xpose.msra.mxu0 0.0
  %753 = vmatprep.subr.mxu0 0.0
  %754 = vmatpush1.xpose.msra.mxu0 0.0
  %755 = vmatprep.subr.mxu0 0.0
  %756 = vmatpush1.xpose.msra.mxu0 0.0
  %757 = vmatprep.subr.mxu0 0.0
  %758 = vmatpush1.xpose.msra.mxu0 0.0
  %759 = vmatprep.subr.mxu0 0.0
  %760 = vmatpush1.xpose.msra.mxu0 0.0
  %761 = vmatprep.subr.mxu0 0.0
  %762 = vmatpush1.xpose.msra.mxu0 0.0
  %763 = vmatprep.subr.mxu0 0.0
  %764 = vmatpush1.xpose.msra.mxu0 0.0
  %765 = vmatprep.subr.mxu0 0.0
  %766 = vmatpush1.xpose.msra.mxu0 0.0
  %767 = vmatprep.subr.mxu0 0.0
  %768 = vmatpush1.xpose.msra.mxu0 0.0
  %769 = vmatprep.subr.mxu0 0.0
  %770 = vmatpush1.xpose.msra.mxu0 0.0
  %771 = vmatprep.mubr.f32.mxu0 0.0
  %v772 = vand.u32 %v72, 4294901760
  %773 = vmatmul.mubr.f32.gmra.mrb[0].mxu0 %v772
  %v774 = vpop.f32.mrb[0].mxu0
  %v775 = vadd.f32 %v632, %v774
  %v776 = vpop.f32.mrb[0].mxu0
  %777 = vmatprep.mubr.f32.mxu0 0.0
  %v778 = vand.u32 %v75, 4294901760
  %779 = vmatmul.mubr.f32.gmra.mrb[0].mxu0 %v778
  %v780 = vpop.f32.mrb[0].mxu0
  %v781 = vadd.f32 %v640, %v780
  %v782 = vpop.f32.mrb[0].mxu0
  %783 = vmatprep.mubr.f32.mxu0 0.0
  %v784 = vand.u32 %v78, 4294901760
  %785 = vmatmul.mubr.f32.gmra.mrb[0].mxu0 %v784
  %v786 = vpop.f32.mrb[0].mxu0
  %v787 = vadd.f32 %v648, %v786
  %v788 = vpop.f32.mrb[0].mxu0
  %789 = vmatprep.mubr.f32.mxu0 0.0
  %v790 = vand.u32 %v81, 4294901760
  %791 = vmatmul.mubr.f32.gmra.mrb[0].mxu0 %v790
  %v792 = vpop.f32.mrb[0].mxu0
  %v793 = vadd.f32 %v656, %v792
  %v794 = vpop.f32.mrb[0].mxu0
  %795 = vdwg.mxu0
  %796 = vmatprep.subr.mxu0 0.0
  %v797 = vand.u32 %v84, 4294901760
  %798 = vmatpush1.xpose.msra.mxu0 %v797
  %799 = vmatprep.subr.mxu0 0.0
  %v800 = vand.u32 %v87, 4294901760
  %801 = vmatpush1.xpose.msra.mxu0 %v800
  %802 = vmatprep.subr.mxu0 0.0
  %v803 = vand.u32 %v90, 4294901760
  %804 = vmatpush1.xpose.msra.mxu0 %v803
  %805 = vmatprep.subr.mxu0 0.0
  %v806 = vand.u32 %v93, 4294901760
  %807 = vmatpush1.xpose.msra.mxu0 %v806
  %808 = vmatprep.subr.mxu0 0.0
  %v809 = vand.u32 %v96, 4294901760
  %810 = vmatpush1.xpose.msra.mxu0 %v809
  %811 = vmatprep.subr.mxu0 0.0
  %v812 = vand.u32 %v99, 4294901760
  %813 = vmatpush1.xpose.msra.mxu0 %v812
  %814 = vmatprep.subr.mxu0 0.0
  %v815 = vand.u32 %v102, 4294901760
  %816 = vmatpush1.xpose.msra.mxu0 %v815
  %817 = vmatprep.subr.mxu0 0.0
  %v818 = vand.u32 %v105, 4294901760
  %819 = vmatpush1.xpose.msra.mxu0 %v818
  %820 = vmatprep.subr.mxu0 0.0
  %v821 = vand.u32 %v108, 4294901760
  %822 = vmatpush1.xpose.msra.mxu0 %v821
  %823 = vmatprep.subr.mxu0 0.0
  %v824 = vand.u32 %v111, 4294901760
  %825 = vmatpush1.xpose.msra.mxu0 %v824
  %826 = vmatprep.subr.mxu0 0.0
  %v827 = vand.u32 %v114, 4294901760
  %828 = vmatpush1.xpose.msra.mxu0 %v827
  %829 = vmatprep.subr.mxu0 0.0
  %v830 = vand.u32 %v117, 4294901760
  %831 = vmatpush1.xpose.msra.mxu0 %v830
  %832 = vmatprep.subr.mxu0 0.0
  %v833 = vand.u32 %v120, 4294901760
  %834 = vmatpush1.xpose.msra.mxu0 %v833
  %835 = vmatprep.subr.mxu0 0.0
  %v836 = vand.u32 %v123, 4294901760
  %837 = vmatpush1.xpose.msra.mxu0 %v836
  %838 = vmatprep.subr.mxu0 0.0
  %v839 = vand.u32 %v126, 4294901760
  %840 = vmatpush1.xpose.msra.mxu0 %v839
  %841 = vmatprep.subr.mxu0 0.0
  %v842 = vand.u32 %v129, 4294901760
  %843 = vmatpush1.xpose.msra.mxu0 %v842
  %844 = vmatprep.subr.mxu0 0.0
  %845 = vmatpush1.xpose.msra.mxu0 0.0
  %846 = vmatprep.subr.mxu0 0.0
  %847 = vmatpush1.xpose.msra.mxu0 0.0
  %848 = vmatprep.subr.mxu0 0.0
  %849 = vmatpush1.xpose.msra.mxu0 0.0
  %850 = vmatprep.subr.mxu0 0.0
  %851 = vmatpush1.xpose.msra.mxu0 0.0
  %852 = vmatprep.subr.mxu0 0.0
  %853 = vmatpush1.xpose.msra.mxu0 0.0
  %854 = vmatprep.subr.mxu0 0.0
  %855 = vmatpush1.xpose.msra.mxu0 0.0
  %856 = vmatprep.subr.mxu0 0.0
  %857 = vmatpush1.xpose.msra.mxu0 0.0
  %858 = vmatprep.subr.mxu0 0.0
  %859 = vmatpush1.xpose.msra.mxu0 0.0
  %860 = vmatprep.subr.mxu0 0.0
  %861 = vmatpush1.xpose.msra.mxu0 0.0
  %862 = vmatprep.subr.mxu0 0.0
  %863 = vmatpush1.xpose.msra.mxu0 0.0
  %864 = vmatprep.subr.mxu0 0.0
  %865 = vmatpush1.xpose.msra.mxu0 0.0
  %866 = vmatprep.subr.mxu0 0.0
  %867 = vmatpush1.xpose.msra.mxu0 0.0
  %868 = vmatprep.subr.mxu0 0.0
  %869 = vmatpush1.xpose.msra.mxu0 0.0
  %870 = vmatprep.subr.mxu0 0.0
  %871 = vmatpush1.xpose.msra.mxu0 0.0
  %872 = vmatprep.subr.mxu0 0.0
  %873 = vmatpush1.xpose.msra.mxu0 0.0
  %874 = vmatprep.subr.mxu0 0.0
  %875 = vmatpush1.xpose.msra.mxu0 0.0
  %876 = vmatprep.mubr.f32.mxu0 0.0
  %v877 = vand.u32 %v72, 4294901760
  %878 = vmatmul.mubr.f32.gmra.mrb[0].mxu0 %v877
  %v879 = vpop.f32.mrb[0].mxu0
  %v880 = vadd.f32 %v775, %v879
  %v881 = vpop.f32.mrb[0].mxu0
  %882 = vmatprep.mubr.f32.mxu0 0.0
  %v883 = vand.u32 %v75, 4294901760
  %884 = vmatmul.mubr.f32.gmra.mrb[0].mxu0 %v883
  %v885 = vpop.f32.mrb[0].mxu0
  %v886 = vadd.f32 %v781, %v885
  %v887 = vpop.f32.mrb[0].mxu0
  %888 = vmatprep.mubr.f32.mxu0 0.0
  %v889 = vand.u32 %v78, 4294901760
  %890 = vmatmul.mubr.f32.gmra.mrb[0].mxu0 %v889
  %v891 = vpop.f32.mrb[0].mxu0
  %v892 = vadd.f32 %v787, %v891
  %v893 = vpop.f32.mrb[0].mxu0
  %894 = vmatprep.mubr.f32.mxu0 0.0
  %v895 = vand.u32 %v81, 4294901760
  %896 = vmatmul.mubr.f32.gmra.mrb[0].mxu0 %v895
  %v897 = vpop.f32.mrb[0].mxu0
  %v898 = vadd.f32 %v793, %v897
  %v899 = vpop.f32.mrb[0].mxu0
  %900 = vdwg.mxu0
  %v901 = vmul.f32 %v880, 0.909
  %v902 = vmul.f32 %v886, 0.909
  %v903 = vmul.f32 %v892, 0.909
  %v904 = vmul.f32 %v898, 0.909
  %v905 = vxor.u32 %v880, 2147483648
  %v906 = vxor.u32 %v886, 2147483648
  %v907 = vxor.u32 %v892, 2147483648
  %v908 = vxor.u32 %v898, 2147483648
  %v909 = vmul.f32 %v905, 1.442695
  %v910 = vpow.pop %v909
  %v911 = vmul.f32 %v906, 1.442695
  %v912 = vpow.pop %v911
  %v913 = vmul.f32 %v907, 1.442695
  %v914 = vpow.pop %v913
  %v915 = vmul.f32 %v908, 1.442695
  %v916 = vpow.pop %v915
  %v917 = vadd.f32 %v910, 1.0
  %v918 = vadd.f32 %v912, 1.0
  %v919 = vadd.f32 %v914, 1.0
  %v920 = vadd.f32 %v916, 1.0
  %v921 = vrcp.pop %v917
  %v922 = vmul.f32 1.0, %v921
  %v923 = vrcp.pop %v918
  %v924 = vmul.f32 1.0, %v923
  %v925 = vrcp.pop %v919
  %v926 = vmul.f32 1.0, %v925
  %v927 = vrcp.pop %v920
  %v928 = vmul.f32 1.0, %v927
  %v929 = vmul.f32 %v901, %v922
  %v930 = vmul.f32 %v902, %v924
  %v931 = vmul.f32 %v903, %v926
  %v932 = vmul.f32 %v904, %v928
  %v933 = vld [vmem:[%s3] sm:$0xff]
  %v934 = vld [vmem:[%s3 + $0x8] sm:$0xff]
  %v935 = vld [vmem:[%s3 + $0x10] sm:$0xff]
  %v936 = vld [vmem:[%s3 + $0x18] sm:$0xff]
  %v937 = vld [vmem:[%s4] sm:$0xff]
  %v938 = vld [vmem:[%s4 + $0x8] sm:$0xff]
  %v939 = vld [vmem:[%s4 + $0x10] sm:$0xff]
  %v940 = vld [vmem:[%s4 + $0x18] sm:$0xff]
  %942 = vset.pattern.permute.xlu0 0
  %943 = vperm.xlu0 %942, %v937
  %v944 = vpop.permute.xlu0 %943
  %947 = vset.pattern.permute.xlu0 0
  %948 = vperm.xlu0 %947, %v938
  %v949 = vpop.permute.xlu0 %948
  %952 = vset.pattern.permute.xlu0 0
  %953 = vperm.xlu0 %952, %v939
  %v954 = vpop.permute.xlu0 %953
  %957 = vset.pattern.permute.xlu0 0
  %958 = vperm.xlu0 %957, %v940
  %v959 = vpop.permute.xlu0 %958
  %vm961 = vcmask 261120
  %v963 = vsel %vm961, %v933, 0
  %v966 = vsel %vm961, %v934, 0
  %v969 = vsel %vm961, %v935, 0
  %v972 = vsel %vm961, %v936, 0
  %974 = vmatprep.subr.mxu0 0.0
  %v975 = vand.u32 %v929, 4294901760
  %976 = vmatpush1.msra.mxu0 %v975
  %977 = vmatprep.subr.mxu0 0.0
  %v978 = vand.u32 %v930, 4294901760
  %979 = vmatpush1.msra.mxu0 %v978
  %980 = vmatprep.subr.mxu0 0.0
  %v981 = vand.u32 %v931, 4294901760
  %982 = vmatpush1.msra.mxu0 %v981
  %983 = vmatprep.subr.mxu0 0.0
  %v984 = vand.u32 %v932, 4294901760
  %985 = vmatpush1.msra.mxu0 %v984
  %986 = vmatprep.subr.mxu0 0.0
  %987 = vmatpush1.msra.mxu0 0.0
  %988 = vmatprep.subr.mxu0 0.0
  %989 = vmatpush1.msra.mxu0 0.0
  %990 = vmatprep.subr.mxu0 0.0
  %991 = vmatpush1.msra.mxu0 0.0
  %992 = vmatprep.subr.mxu0 0.0
  %993 = vmatpush1.msra.mxu0 0.0
  %994 = vmatprep.subr.mxu0 0.0
  %995 = vmatpush1.msra.mxu0 0.0
  %996 = vmatprep.subr.mxu0 0.0
  %997 = vmatpush1.msra.mxu0 0.0
  %998 = vmatprep.subr.mxu0 0.0
  %999 = vmatpush1.msra.mxu0 0.0
  %1000 = vmatprep.subr.mxu0 0.0
  %1001 = vmatpush1.msra.mxu0 0.0
  %1002 = vmatprep.subr.mxu0 0.0
  %1003 = vmatpush1.msra.mxu0 0.0
  %1004 = vmatprep.subr.mxu0 0.0
  %1005 = vmatpush1.msra.mxu0 0.0
  %1006 = vmatprep.subr.mxu0 0.0
  %1007 = vmatpush1.msra.mxu0 0.0
  %1008 = vmatprep.subr.mxu0 0.0
  %1009 = vmatpush1.msra.mxu0 0.0
  %1010 = vmatprep.subr.mxu0 0.0
  %1011 = vmatpush1.msra.mxu0 0.0
  %1012 = vmatprep.subr.mxu0 0.0
  %1013 = vmatpush1.msra.mxu0 0.0
  %1014 = vmatprep.subr.mxu0 0.0
  %1015 = vmatpush1.msra.mxu0 0.0
  %1016 = vmatprep.subr.mxu0 0.0
  %1017 = vmatpush1.msra.mxu0 0.0
  %1018 = vmatprep.subr.mxu0 0.0
  %1019 = vmatpush1.msra.mxu0 0.0
  %1020 = vmatprep.subr.mxu0 0.0
  %1021 = vmatpush1.msra.mxu0 0.0
  %1022 = vmatprep.subr.mxu0 0.0
  %1023 = vmatpush1.msra.mxu0 0.0
  %1024 = vmatprep.subr.mxu0 0.0
  %1025 = vmatpush1.msra.mxu0 0.0
  %1026 = vmatprep.subr.mxu0 0.0
  %1027 = vmatpush1.msra.mxu0 0.0
  %1028 = vmatprep.subr.mxu0 0.0
  %1029 = vmatpush1.msra.mxu0 0.0
  %1030 = vmatprep.subr.mxu0 0.0
  %1031 = vmatpush1.msra.mxu0 0.0
  %1032 = vmatprep.subr.mxu0 0.0
  %1033 = vmatpush1.msra.mxu0 0.0
  %1034 = vmatprep.subr.mxu0 0.0
  %1035 = vmatpush1.msra.mxu0 0.0
  %1036 = vmatprep.subr.mxu0 0.0
  %1037 = vmatpush1.msra.mxu0 0.0
  %1038 = vmatprep.subr.mxu0 0.0
  %1039 = vmatpush1.msra.mxu0 0.0
  %1040 = vmatprep.subr.mxu0 0.0
  %1041 = vmatpush1.msra.mxu0 0.0
  %1042 = vmatprep.mubr.f32.mxu0 0.0
  %v1043 = vand.u32 %v963, 4294901760
  %v1044 = vsub.f32 %v963, %v1043
  %v1045 = vand.u32 %v1044, 4294901760
  %v1046 = vsub.f32 %v1044, %v1045
  %v1047 = vand.u32 %v1046, 4294901760
  %1048 = vmatmul.mubr.f32.gmra.mrb[0].mxu0 %v1047
  %v1049 = vpop.f32.mrb[0].mxu0
  %v1050 = vadd.f32 %v944, %v1049
  %v1051 = vpop.f32.mrb[0].mxu0
  %1052 = vmatprep.mubr.f32.mxu0 0.0
  %v1053 = vand.u32 %v966, 4294901760
  %v1054 = vsub.f32 %v966, %v1053
  %v1055 = vand.u32 %v1054, 4294901760
  %v1056 = vsub.f32 %v1054, %v1055
  %v1057 = vand.u32 %v1056, 4294901760
  %1058 = vmatmul.mubr.f32.gmra.mrb[0].mxu0 %v1057
  %v1059 = vpop.f32.mrb[0].mxu0
  %v1060 = vadd.f32 %v949, %v1059
  %v1061 = vpop.f32.mrb[0].mxu0
  %1062 = vmatprep.mubr.f32.mxu0 0.0
  %v1063 = vand.u32 %v969, 4294901760
  %v1064 = vsub.f32 %v969, %v1063
  %v1065 = vand.u32 %v1064, 4294901760
  %v1066 = vsub.f32 %v1064, %v1065
  %v1067 = vand.u32 %v1066, 4294901760
  %1068 = vmatmul.mubr.f32.gmra.mrb[0].mxu0 %v1067
  %v1069 = vpop.f32.mrb[0].mxu0
  %v1070 = vadd.f32 %v954, %v1069
  %v1071 = vpop.f32.mrb[0].mxu0
  %1072 = vmatprep.mubr.f32.mxu0 0.0
  %v1073 = vand.u32 %v972, 4294901760
  %v1074 = vsub.f32 %v972, %v1073
  %v1075 = vand.u32 %v1074, 4294901760
  %v1076 = vsub.f32 %v1074, %v1075
  %v1077 = vand.u32 %v1076, 4294901760
  %1078 = vmatmul.mubr.f32.gmra.mrb[0].mxu0 %v1077
  %v1079 = vpop.f32.mrb[0].mxu0
  %v1080 = vadd.f32 %v959, %v1079
  %v1081 = vpop.f32.mrb[0].mxu0
  %1082 = vdwg.mxu0
  %1083 = vmatprep.subr.mxu0 0.0
  %v1084 = vand.u32 %v929, 4294901760
  %v1085 = vsub.f32 %v929, %v1084
  %v1086 = vand.u32 %v1085, 4294901760
  %v1087 = vsub.f32 %v1085, %v1086
  %v1088 = vand.u32 %v1087, 4294901760
  %1089 = vmatpush1.msra.mxu0 %v1088
  %1090 = vmatprep.subr.mxu0 0.0
  %v1091 = vand.u32 %v930, 4294901760
  %v1092 = vsub.f32 %v930, %v1091
  %v1093 = vand.u32 %v1092, 4294901760
  %v1094 = vsub.f32 %v1092, %v1093
  %v1095 = vand.u32 %v1094, 4294901760
  %1096 = vmatpush1.msra.mxu0 %v1095
  %1097 = vmatprep.subr.mxu0 0.0
  %v1098 = vand.u32 %v931, 4294901760
  %v1099 = vsub.f32 %v931, %v1098
  %v1100 = vand.u32 %v1099, 4294901760
  %v1101 = vsub.f32 %v1099, %v1100
  %v1102 = vand.u32 %v1101, 4294901760
  %1103 = vmatpush1.msra.mxu0 %v1102
  %1104 = vmatprep.subr.mxu0 0.0
  %v1105 = vand.u32 %v932, 4294901760
  %v1106 = vsub.f32 %v932, %v1105
  %v1107 = vand.u32 %v1106, 4294901760
  %v1108 = vsub.f32 %v1106, %v1107
  %v1109 = vand.u32 %v1108, 4294901760
  %1110 = vmatpush1.msra.mxu0 %v1109
  %1111 = vmatprep.subr.mxu0 0.0
  %1112 = vmatpush1.msra.mxu0 0.0
  %1113 = vmatprep.subr.mxu0 0.0
  %1114 = vmatpush1.msra.mxu0 0.0
  %1115 = vmatprep.subr.mxu0 0.0
  %1116 = vmatpush1.msra.mxu0 0.0
  %1117 = vmatprep.subr.mxu0 0.0
  %1118 = vmatpush1.msra.mxu0 0.0
  %1119 = vmatprep.subr.mxu0 0.0
  %1120 = vmatpush1.msra.mxu0 0.0
  %1121 = vmatprep.subr.mxu0 0.0
  %1122 = vmatpush1.msra.mxu0 0.0
  %1123 = vmatprep.subr.mxu0 0.0
  %1124 = vmatpush1.msra.mxu0 0.0
  %1125 = vmatprep.subr.mxu0 0.0
  %1126 = vmatpush1.msra.mxu0 0.0
  %1127 = vmatprep.subr.mxu0 0.0
  %1128 = vmatpush1.msra.mxu0 0.0
  %1129 = vmatprep.subr.mxu0 0.0
  %1130 = vmatpush1.msra.mxu0 0.0
  %1131 = vmatprep.subr.mxu0 0.0
  %1132 = vmatpush1.msra.mxu0 0.0
  %1133 = vmatprep.subr.mxu0 0.0
  %1134 = vmatpush1.msra.mxu0 0.0
  %1135 = vmatprep.subr.mxu0 0.0
  %1136 = vmatpush1.msra.mxu0 0.0
  %1137 = vmatprep.subr.mxu0 0.0
  %1138 = vmatpush1.msra.mxu0 0.0
  %1139 = vmatprep.subr.mxu0 0.0
  %1140 = vmatpush1.msra.mxu0 0.0
  %1141 = vmatprep.subr.mxu0 0.0
  %1142 = vmatpush1.msra.mxu0 0.0
  %1143 = vmatprep.subr.mxu0 0.0
  %1144 = vmatpush1.msra.mxu0 0.0
  %1145 = vmatprep.subr.mxu0 0.0
  %1146 = vmatpush1.msra.mxu0 0.0
  %1147 = vmatprep.subr.mxu0 0.0
  %1148 = vmatpush1.msra.mxu0 0.0
  %1149 = vmatprep.subr.mxu0 0.0
  %1150 = vmatpush1.msra.mxu0 0.0
  %1151 = vmatprep.subr.mxu0 0.0
  %1152 = vmatpush1.msra.mxu0 0.0
  %1153 = vmatprep.subr.mxu0 0.0
  %1154 = vmatpush1.msra.mxu0 0.0
  %1155 = vmatprep.subr.mxu0 0.0
  %1156 = vmatpush1.msra.mxu0 0.0
  %1157 = vmatprep.subr.mxu0 0.0
  %1158 = vmatpush1.msra.mxu0 0.0
  %1159 = vmatprep.subr.mxu0 0.0
  %1160 = vmatpush1.msra.mxu0 0.0
  %1161 = vmatprep.subr.mxu0 0.0
  %1162 = vmatpush1.msra.mxu0 0.0
  %1163 = vmatprep.subr.mxu0 0.0
  %1164 = vmatpush1.msra.mxu0 0.0
  %1165 = vmatprep.subr.mxu0 0.0
  %1166 = vmatpush1.msra.mxu0 0.0
  %1167 = vmatprep.mubr.f32.mxu0 0.0
  %v1168 = vand.u32 %v963, 4294901760
  %1169 = vmatmul.mubr.f32.gmra.mrb[0].mxu0 %v1168
  %v1170 = vpop.f32.mrb[0].mxu0
  %v1171 = vadd.f32 %v1050, %v1170
  %v1172 = vpop.f32.mrb[0].mxu0
  %1173 = vmatprep.mubr.f32.mxu0 0.0
  %v1174 = vand.u32 %v966, 4294901760
  %1175 = vmatmul.mubr.f32.gmra.mrb[0].mxu0 %v1174
  %v1176 = vpop.f32.mrb[0].mxu0
  %v1177 = vadd.f32 %v1060, %v1176
  %v1178 = vpop.f32.mrb[0].mxu0
  %1179 = vmatprep.mubr.f32.mxu0 0.0
  %v1180 = vand.u32 %v969, 4294901760
  %1181 = vmatmul.mubr.f32.gmra.mrb[0].mxu0 %v1180
  %v1182 = vpop.f32.mrb[0].mxu0
  %v1183 = vadd.f32 %v1070, %v1182
  %v1184 = vpop.f32.mrb[0].mxu0
  %1185 = vmatprep.mubr.f32.mxu0 0.0
  %v1186 = vand.u32 %v972, 4294901760
  %1187 = vmatmul.mubr.f32.gmra.mrb[0].mxu0 %v1186
  %v1188 = vpop.f32.mrb[0].mxu0
  %v1189 = vadd.f32 %v1080, %v1188
  %v1190 = vpop.f32.mrb[0].mxu0
  %1191 = vdwg.mxu0
  %1192 = vmatprep.subr.mxu0 0.0
  %v1193 = vand.u32 %v929, 4294901760
  %v1194 = vsub.f32 %v929, %v1193
  %1195 = vmatpush1.msra.mxu0 %v1194
  %1196 = vmatprep.subr.mxu0 0.0
  %v1197 = vand.u32 %v930, 4294901760
  %v1198 = vsub.f32 %v930, %v1197
  %1199 = vmatpush1.msra.mxu0 %v1198
  %1200 = vmatprep.subr.mxu0 0.0
  %v1201 = vand.u32 %v931, 4294901760
  %v1202 = vsub.f32 %v931, %v1201
  %1203 = vmatpush1.msra.mxu0 %v1202
  %1204 = vmatprep.subr.mxu0 0.0
  %v1205 = vand.u32 %v932, 4294901760
  %v1206 = vsub.f32 %v932, %v1205
  %1207 = vmatpush1.msra.mxu0 %v1206
  %1208 = vmatprep.subr.mxu0 0.0
  %1209 = vmatpush1.msra.mxu0 0.0
  %1210 = vmatprep.subr.mxu0 0.0
  %1211 = vmatpush1.msra.mxu0 0.0
  %1212 = vmatprep.subr.mxu0 0.0
  %1213 = vmatpush1.msra.mxu0 0.0
  %1214 = vmatprep.subr.mxu0 0.0
  %1215 = vmatpush1.msra.mxu0 0.0
  %1216 = vmatprep.subr.mxu0 0.0
  %1217 = vmatpush1.msra.mxu0 0.0
  %1218 = vmatprep.subr.mxu0 0.0
  %1219 = vmatpush1.msra.mxu0 0.0
  %1220 = vmatprep.subr.mxu0 0.0
  %1221 = vmatpush1.msra.mxu0 0.0
  %1222 = vmatprep.subr.mxu0 0.0
  %1223 = vmatpush1.msra.mxu0 0.0
  %1224 = vmatprep.subr.mxu0 0.0
  %1225 = vmatpush1.msra.mxu0 0.0
  %1226 = vmatprep.subr.mxu0 0.0
  %1227 = vmatpush1.msra.mxu0 0.0
  %1228 = vmatprep.subr.mxu0 0.0
  %1229 = vmatpush1.msra.mxu0 0.0
  %1230 = vmatprep.subr.mxu0 0.0
  %1231 = vmatpush1.msra.mxu0 0.0
  %1232 = vmatprep.subr.mxu0 0.0
  %1233 = vmatpush1.msra.mxu0 0.0
  %1234 = vmatprep.subr.mxu0 0.0
  %1235 = vmatpush1.msra.mxu0 0.0
  %1236 = vmatprep.subr.mxu0 0.0
  %1237 = vmatpush1.msra.mxu0 0.0
  %1238 = vmatprep.subr.mxu0 0.0
  %1239 = vmatpush1.msra.mxu0 0.0
  %1240 = vmatprep.subr.mxu0 0.0
  %1241 = vmatpush1.msra.mxu0 0.0
  %1242 = vmatprep.subr.mxu0 0.0
  %1243 = vmatpush1.msra.mxu0 0.0
  %1244 = vmatprep.subr.mxu0 0.0
  %1245 = vmatpush1.msra.mxu0 0.0
  %1246 = vmatprep.subr.mxu0 0.0
  %1247 = vmatpush1.msra.mxu0 0.0
  %1248 = vmatprep.subr.mxu0 0.0
  %1249 = vmatpush1.msra.mxu0 0.0
  %1250 = vmatprep.subr.mxu0 0.0
  %1251 = vmatpush1.msra.mxu0 0.0
  %1252 = vmatprep.subr.mxu0 0.0
  %1253 = vmatpush1.msra.mxu0 0.0
  %1254 = vmatprep.subr.mxu0 0.0
  %1255 = vmatpush1.msra.mxu0 0.0
  %1256 = vmatprep.subr.mxu0 0.0
  %1257 = vmatpush1.msra.mxu0 0.0
  %1258 = vmatprep.subr.mxu0 0.0
  %1259 = vmatpush1.msra.mxu0 0.0
  %1260 = vmatprep.subr.mxu0 0.0
  %1261 = vmatpush1.msra.mxu0 0.0
  %1262 = vmatprep.subr.mxu0 0.0
  %1263 = vmatpush1.msra.mxu0 0.0
  %1264 = vmatprep.mubr.f32.mxu0 0.0
  %v1265 = vand.u32 %v963, 4294901760
  %v1266 = vsub.f32 %v963, %v1265
  %1267 = vmatmul.mubr.f32.gmra.mrb[0].mxu0 %v1266
  %v1268 = vpop.f32.mrb[0].mxu0
  %v1269 = vadd.f32 %v1171, %v1268
  %v1270 = vpop.f32.mrb[0].mxu0
  %1271 = vmatprep.mubr.f32.mxu0 0.0
  %v1272 = vand.u32 %v966, 4294901760
  %v1273 = vsub.f32 %v966, %v1272
  %1274 = vmatmul.mubr.f32.gmra.mrb[0].mxu0 %v1273
  %v1275 = vpop.f32.mrb[0].mxu0
  %v1276 = vadd.f32 %v1177, %v1275
  %v1277 = vpop.f32.mrb[0].mxu0
  %1278 = vmatprep.mubr.f32.mxu0 0.0
  %v1279 = vand.u32 %v969, 4294901760
  %v1280 = vsub.f32 %v969, %v1279
  %1281 = vmatmul.mubr.f32.gmra.mrb[0].mxu0 %v1280
  %v1282 = vpop.f32.mrb[0].mxu0
  %v1283 = vadd.f32 %v1183, %v1282
  %v1284 = vpop.f32.mrb[0].mxu0
  %1285 = vmatprep.mubr.f32.mxu0 0.0
  %v1286 = vand.u32 %v972, 4294901760
  %v1287 = vsub.f32 %v972, %v1286
  %1288 = vmatmul.mubr.f32.gmra.mrb[0].mxu0 %v1287
  %v1289 = vpop.f32.mrb[0].mxu0
  %v1290 = vadd.f32 %v1189, %v1289
  %v1291 = vpop.f32.mrb[0].mxu0
  %1292 = vdwg.mxu0
  %1293 = vmatprep.subr.mxu0 0.0
  %v1294 = vand.u32 %v929, 4294901760
  %1295 = vmatpush1.msra.mxu0 %v1294
  %1296 = vmatprep.subr.mxu0 0.0
  %v1297 = vand.u32 %v930, 4294901760
  %1298 = vmatpush1.msra.mxu0 %v1297
  %1299 = vmatprep.subr.mxu0 0.0
  %v1300 = vand.u32 %v931, 4294901760
  %1301 = vmatpush1.msra.mxu0 %v1300
  %1302 = vmatprep.subr.mxu0 0.0
  %v1303 = vand.u32 %v932, 4294901760
  %1304 = vmatpush1.msra.mxu0 %v1303
  %1305 = vmatprep.subr.mxu0 0.0
  %1306 = vmatpush1.msra.mxu0 0.0
  %1307 = vmatprep.subr.mxu0 0.0
  %1308 = vmatpush1.msra.mxu0 0.0
  %1309 = vmatprep.subr.mxu0 0.0
  %1310 = vmatpush1.msra.mxu0 0.0
  %1311 = vmatprep.subr.mxu0 0.0
  %1312 = vmatpush1.msra.mxu0 0.0
  %1313 = vmatprep.subr.mxu0 0.0
  %1314 = vmatpush1.msra.mxu0 0.0
  %1315 = vmatprep.subr.mxu0 0.0
  %1316 = vmatpush1.msra.mxu0 0.0
  %1317 = vmatprep.subr.mxu0 0.0
  %1318 = vmatpush1.msra.mxu0 0.0
  %1319 = vmatprep.subr.mxu0 0.0
  %1320 = vmatpush1.msra.mxu0 0.0
  %1321 = vmatprep.subr.mxu0 0.0
  %1322 = vmatpush1.msra.mxu0 0.0
  %1323 = vmatprep.subr.mxu0 0.0
  %1324 = vmatpush1.msra.mxu0 0.0
  %1325 = vmatprep.subr.mxu0 0.0
  %1326 = vmatpush1.msra.mxu0 0.0
  %1327 = vmatprep.subr.mxu0 0.0
  %1328 = vmatpush1.msra.mxu0 0.0
  %1329 = vmatprep.subr.mxu0 0.0
  %1330 = vmatpush1.msra.mxu0 0.0
  %1331 = vmatprep.subr.mxu0 0.0
  %1332 = vmatpush1.msra.mxu0 0.0
  %1333 = vmatprep.subr.mxu0 0.0
  %1334 = vmatpush1.msra.mxu0 0.0
  %1335 = vmatprep.subr.mxu0 0.0
  %1336 = vmatpush1.msra.mxu0 0.0
  %1337 = vmatprep.subr.mxu0 0.0
  %1338 = vmatpush1.msra.mxu0 0.0
  %1339 = vmatprep.subr.mxu0 0.0
  %1340 = vmatpush1.msra.mxu0 0.0
  %1341 = vmatprep.subr.mxu0 0.0
  %1342 = vmatpush1.msra.mxu0 0.0
  %1343 = vmatprep.subr.mxu0 0.0
  %1344 = vmatpush1.msra.mxu0 0.0
  %1345 = vmatprep.subr.mxu0 0.0
  %1346 = vmatpush1.msra.mxu0 0.0
  %1347 = vmatprep.subr.mxu0 0.0
  %1348 = vmatpush1.msra.mxu0 0.0
  %1349 = vmatprep.subr.mxu0 0.0
  %1350 = vmatpush1.msra.mxu0 0.0
  %1351 = vmatprep.subr.mxu0 0.0
  %1352 = vmatpush1.msra.mxu0 0.0
  %1353 = vmatprep.subr.mxu0 0.0
  %1354 = vmatpush1.msra.mxu0 0.0
  %1355 = vmatprep.subr.mxu0 0.0
  %1356 = vmatpush1.msra.mxu0 0.0
  %1357 = vmatprep.subr.mxu0 0.0
  %1358 = vmatpush1.msra.mxu0 0.0
  %1359 = vmatprep.subr.mxu0 0.0
  %1360 = vmatpush1.msra.mxu0 0.0
  %1361 = vmatprep.mubr.f32.mxu0 0.0
  %v1362 = vand.u32 %v963, 4294901760
  %v1363 = vsub.f32 %v963, %v1362
  %v1364 = vand.u32 %v1363, 4294901760
  %1365 = vmatmul.mubr.f32.gmra.mrb[0].mxu0 %v1364
  %v1366 = vpop.f32.mrb[0].mxu0
  %v1367 = vadd.f32 %v1269, %v1366
  %v1368 = vpop.f32.mrb[0].mxu0
  %1369 = vmatprep.mubr.f32.mxu0 0.0
  %v1370 = vand.u32 %v966, 4294901760
  %v1371 = vsub.f32 %v966, %v1370
  %v1372 = vand.u32 %v1371, 4294901760
  %1373 = vmatmul.mubr.f32.gmra.mrb[0].mxu0 %v1372
  %v1374 = vpop.f32.mrb[0].mxu0
  %v1375 = vadd.f32 %v1276, %v1374
  %v1376 = vpop.f32.mrb[0].mxu0
  %1377 = vmatprep.mubr.f32.mxu0 0.0
  %v1378 = vand.u32 %v969, 4294901760
  %v1379 = vsub.f32 %v969, %v1378
  %v1380 = vand.u32 %v1379, 4294901760
  %1381 = vmatmul.mubr.f32.gmra.mrb[0].mxu0 %v1380
  %v1382 = vpop.f32.mrb[0].mxu0
  %v1383 = vadd.f32 %v1283, %v1382
  %v1384 = vpop.f32.mrb[0].mxu0
  %1385 = vmatprep.mubr.f32.mxu0 0.0
  %v1386 = vand.u32 %v972, 4294901760
  %v1387 = vsub.f32 %v972, %v1386
  %v1388 = vand.u32 %v1387, 4294901760
  %1389 = vmatmul.mubr.f32.gmra.mrb[0].mxu0 %v1388
  %v1390 = vpop.f32.mrb[0].mxu0
  %v1391 = vadd.f32 %v1290, %v1390
  %v1392 = vpop.f32.mrb[0].mxu0
  %1393 = vdwg.mxu0
  %1394 = vmatprep.subr.mxu0 0.0
  %v1395 = vand.u32 %v929, 4294901760
  %v1396 = vsub.f32 %v929, %v1395
  %v1397 = vand.u32 %v1396, 4294901760
  %1398 = vmatpush1.msra.mxu0 %v1397
  %1399 = vmatprep.subr.mxu0 0.0
  %v1400 = vand.u32 %v930, 4294901760
  %v1401 = vsub.f32 %v930, %v1400
  %v1402 = vand.u32 %v1401, 4294901760
  %1403 = vmatpush1.msra.mxu0 %v1402
  %1404 = vmatprep.subr.mxu0 0.0
  %v1405 = vand.u32 %v931, 4294901760
  %v1406 = vsub.f32 %v931, %v1405
  %v1407 = vand.u32 %v1406, 4294901760
  %1408 = vmatpush1.msra.mxu0 %v1407
  %1409 = vmatprep.subr.mxu0 0.0
  %v1410 = vand.u32 %v932, 4294901760
  %v1411 = vsub.f32 %v932, %v1410
  %v1412 = vand.u32 %v1411, 4294901760
  %1413 = vmatpush1.msra.mxu0 %v1412
  %1414 = vmatprep.subr.mxu0 0.0
  %1415 = vmatpush1.msra.mxu0 0.0
  %1416 = vmatprep.subr.mxu0 0.0
  %1417 = vmatpush1.msra.mxu0 0.0
  %1418 = vmatprep.subr.mxu0 0.0
  %1419 = vmatpush1.msra.mxu0 0.0
  %1420 = vmatprep.subr.mxu0 0.0
  %1421 = vmatpush1.msra.mxu0 0.0
  %1422 = vmatprep.subr.mxu0 0.0
  %1423 = vmatpush1.msra.mxu0 0.0
  %1424 = vmatprep.subr.mxu0 0.0
  %1425 = vmatpush1.msra.mxu0 0.0
  %1426 = vmatprep.subr.mxu0 0.0
  %1427 = vmatpush1.msra.mxu0 0.0
  %1428 = vmatprep.subr.mxu0 0.0
  %1429 = vmatpush1.msra.mxu0 0.0
  %1430 = vmatprep.subr.mxu0 0.0
  %1431 = vmatpush1.msra.mxu0 0.0
  %1432 = vmatprep.subr.mxu0 0.0
  %1433 = vmatpush1.msra.mxu0 0.0
  %1434 = vmatprep.subr.mxu0 0.0
  %1435 = vmatpush1.msra.mxu0 0.0
  %1436 = vmatprep.subr.mxu0 0.0
  %1437 = vmatpush1.msra.mxu0 0.0
  %1438 = vmatprep.subr.mxu0 0.0
  %1439 = vmatpush1.msra.mxu0 0.0
  %1440 = vmatprep.subr.mxu0 0.0
  %1441 = vmatpush1.msra.mxu0 0.0
  %1442 = vmatprep.subr.mxu0 0.0
  %1443 = vmatpush1.msra.mxu0 0.0
  %1444 = vmatprep.subr.mxu0 0.0
  %1445 = vmatpush1.msra.mxu0 0.0
  %1446 = vmatprep.subr.mxu0 0.0
  %1447 = vmatpush1.msra.mxu0 0.0
  %1448 = vmatprep.subr.mxu0 0.0
  %1449 = vmatpush1.msra.mxu0 0.0
  %1450 = vmatprep.subr.mxu0 0.0
  %1451 = vmatpush1.msra.mxu0 0.0
  %1452 = vmatprep.subr.mxu0 0.0
  %1453 = vmatpush1.msra.mxu0 0.0
  %1454 = vmatprep.subr.mxu0 0.0
  %1455 = vmatpush1.msra.mxu0 0.0
  %1456 = vmatprep.subr.mxu0 0.0
  %1457 = vmatpush1.msra.mxu0 0.0
  %1458 = vmatprep.subr.mxu0 0.0
  %1459 = vmatpush1.msra.mxu0 0.0
  %1460 = vmatprep.subr.mxu0 0.0
  %1461 = vmatpush1.msra.mxu0 0.0
  %1462 = vmatprep.subr.mxu0 0.0
  %1463 = vmatpush1.msra.mxu0 0.0
  %1464 = vmatprep.subr.mxu0 0.0
  %1465 = vmatpush1.msra.mxu0 0.0
  %1466 = vmatprep.subr.mxu0 0.0
  %1467 = vmatpush1.msra.mxu0 0.0
  %1468 = vmatprep.subr.mxu0 0.0
  %1469 = vmatpush1.msra.mxu0 0.0
  %1470 = vmatprep.mubr.f32.mxu0 0.0
  %v1471 = vand.u32 %v963, 4294901760
  %1472 = vmatmul.mubr.f32.gmra.mrb[0].mxu0 %v1471
  %v1473 = vpop.f32.mrb[0].mxu0
  %v1474 = vadd.f32 %v1367, %v1473
  %v1475 = vpop.f32.mrb[0].mxu0
  %1476 = vmatprep.mubr.f32.mxu0 0.0
  %v1477 = vand.u32 %v966, 4294901760
  %1478 = vmatmul.mubr.f32.gmra.mrb[0].mxu0 %v1477
  %v1479 = vpop.f32.mrb[0].mxu0
  %v1480 = vadd.f32 %v1375, %v1479
  %v1481 = vpop.f32.mrb[0].mxu0
  %1482 = vmatprep.mubr.f32.mxu0 0.0
  %v1483 = vand.u32 %v969, 4294901760
  %1484 = vmatmul.mubr.f32.gmra.mrb[0].mxu0 %v1483
  %v1485 = vpop.f32.mrb[0].mxu0
  %v1486 = vadd.f32 %v1383, %v1485
  %v1487 = vpop.f32.mrb[0].mxu0
  %1488 = vmatprep.mubr.f32.mxu0 0.0
  %v1489 = vand.u32 %v972, 4294901760
  %1490 = vmatmul.mubr.f32.gmra.mrb[0].mxu0 %v1489
  %v1491 = vpop.f32.mrb[0].mxu0
  %v1492 = vadd.f32 %v1391, %v1491
  %v1493 = vpop.f32.mrb[0].mxu0
  %1494 = vdwg.mxu0
  %1495 = vmatprep.subr.mxu0 0.0
  %v1496 = vand.u32 %v929, 4294901760
  %1497 = vmatpush1.msra.mxu0 %v1496
  %1498 = vmatprep.subr.mxu0 0.0
  %v1499 = vand.u32 %v930, 4294901760
  %1500 = vmatpush1.msra.mxu0 %v1499
  %1501 = vmatprep.subr.mxu0 0.0
  %v1502 = vand.u32 %v931, 4294901760
  %1503 = vmatpush1.msra.mxu0 %v1502
  %1504 = vmatprep.subr.mxu0 0.0
  %v1505 = vand.u32 %v932, 4294901760
  %1506 = vmatpush1.msra.mxu0 %v1505
  %1507 = vmatprep.subr.mxu0 0.0
  %1508 = vmatpush1.msra.mxu0 0.0
  %1509 = vmatprep.subr.mxu0 0.0
  %1510 = vmatpush1.msra.mxu0 0.0
  %1511 = vmatprep.subr.mxu0 0.0
  %1512 = vmatpush1.msra.mxu0 0.0
  %1513 = vmatprep.subr.mxu0 0.0
  %1514 = vmatpush1.msra.mxu0 0.0
  %1515 = vmatprep.subr.mxu0 0.0
  %1516 = vmatpush1.msra.mxu0 0.0
  %1517 = vmatprep.subr.mxu0 0.0
  %1518 = vmatpush1.msra.mxu0 0.0
  %1519 = vmatprep.subr.mxu0 0.0
  %1520 = vmatpush1.msra.mxu0 0.0
  %1521 = vmatprep.subr.mxu0 0.0
  %1522 = vmatpush1.msra.mxu0 0.0
  %1523 = vmatprep.subr.mxu0 0.0
  %1524 = vmatpush1.msra.mxu0 0.0
  %1525 = vmatprep.subr.mxu0 0.0
  %1526 = vmatpush1.msra.mxu0 0.0
  %1527 = vmatprep.subr.mxu0 0.0
  %1528 = vmatpush1.msra.mxu0 0.0
  %1529 = vmatprep.subr.mxu0 0.0
  %1530 = vmatpush1.msra.mxu0 0.0
  %1531 = vmatprep.subr.mxu0 0.0
  %1532 = vmatpush1.msra.mxu0 0.0
  %1533 = vmatprep.subr.mxu0 0.0
  %1534 = vmatpush1.msra.mxu0 0.0
  %1535 = vmatprep.subr.mxu0 0.0
  %1536 = vmatpush1.msra.mxu0 0.0
  %1537 = vmatprep.subr.mxu0 0.0
  %1538 = vmatpush1.msra.mxu0 0.0
  %1539 = vmatprep.subr.mxu0 0.0
  %1540 = vmatpush1.msra.mxu0 0.0
  %1541 = vmatprep.subr.mxu0 0.0
  %1542 = vmatpush1.msra.mxu0 0.0
  %1543 = vmatprep.subr.mxu0 0.0
  %1544 = vmatpush1.msra.mxu0 0.0
  %1545 = vmatprep.subr.mxu0 0.0
  %1546 = vmatpush1.msra.mxu0 0.0
  %1547 = vmatprep.subr.mxu0 0.0
  %1548 = vmatpush1.msra.mxu0 0.0
  %1549 = vmatprep.subr.mxu0 0.0
  %1550 = vmatpush1.msra.mxu0 0.0
  %1551 = vmatprep.subr.mxu0 0.0
  %1552 = vmatpush1.msra.mxu0 0.0
  %1553 = vmatprep.subr.mxu0 0.0
  %1554 = vmatpush1.msra.mxu0 0.0
  %1555 = vmatprep.subr.mxu0 0.0
  %1556 = vmatpush1.msra.mxu0 0.0
  %1557 = vmatprep.subr.mxu0 0.0
  %1558 = vmatpush1.msra.mxu0 0.0
  %1559 = vmatprep.subr.mxu0 0.0
  %1560 = vmatpush1.msra.mxu0 0.0
  %1561 = vmatprep.subr.mxu0 0.0
  %1562 = vmatpush1.msra.mxu0 0.0
  %1563 = vmatprep.mubr.f32.mxu0 0.0
  %v1564 = vand.u32 %v963, 4294901760
  %1565 = vmatmul.mubr.f32.gmra.mrb[0].mxu0 %v1564
  %v1566 = vpop.f32.mrb[0].mxu0
  %v1567 = vadd.f32 %v1474, %v1566
  %v1568 = vpop.f32.mrb[0].mxu0
  %1569 = vmatprep.mubr.f32.mxu0 0.0
  %v1570 = vand.u32 %v966, 4294901760
  %1571 = vmatmul.mubr.f32.gmra.mrb[0].mxu0 %v1570
  %v1572 = vpop.f32.mrb[0].mxu0
  %v1573 = vadd.f32 %v1480, %v1572
  %v1574 = vpop.f32.mrb[0].mxu0
  %1575 = vmatprep.mubr.f32.mxu0 0.0
  %v1576 = vand.u32 %v969, 4294901760
  %1577 = vmatmul.mubr.f32.gmra.mrb[0].mxu0 %v1576
  %v1578 = vpop.f32.mrb[0].mxu0
  %v1579 = vadd.f32 %v1486, %v1578
  %v1580 = vpop.f32.mrb[0].mxu0
  %1581 = vmatprep.mubr.f32.mxu0 0.0
  %v1582 = vand.u32 %v972, 4294901760
  %1583 = vmatmul.mubr.f32.gmra.mrb[0].mxu0 %v1582
  %v1584 = vpop.f32.mrb[0].mxu0
  %v1585 = vadd.f32 %v1492, %v1584
  %v1586 = vpop.f32.mrb[0].mxu0
  %1587 = vdwg.mxu0
  %v1588 = vmul.f32 %v1567, 0.909
  %v1589 = vmul.f32 %v1573, 0.909
  %v1590 = vmul.f32 %v1579, 0.909
  %v1591 = vmul.f32 %v1585, 0.909
  %v1592 = vxor.u32 %v1567, 2147483648
  %v1593 = vxor.u32 %v1573, 2147483648
  %v1594 = vxor.u32 %v1579, 2147483648
  %v1595 = vxor.u32 %v1585, 2147483648
  %v1596 = vmul.f32 %v1592, 1.442695
  %v1597 = vpow.pop %v1596
  %v1598 = vmul.f32 %v1593, 1.442695
  %v1599 = vpow.pop %v1598
  %v1600 = vmul.f32 %v1594, 1.442695
  %v1601 = vpow.pop %v1600
  %v1602 = vmul.f32 %v1595, 1.442695
  %v1603 = vpow.pop %v1602
  %v1604 = vadd.f32 %v1597, 1.0
  %v1605 = vadd.f32 %v1599, 1.0
  %v1606 = vadd.f32 %v1601, 1.0
  %v1607 = vadd.f32 %v1603, 1.0
  %v1608 = vrcp.pop %v1604
  %v1609 = vmul.f32 1.0, %v1608
  %v1610 = vrcp.pop %v1605
  %v1611 = vmul.f32 1.0, %v1610
  %v1612 = vrcp.pop %v1606
  %v1613 = vmul.f32 1.0, %v1612
  %v1614 = vrcp.pop %v1607
  %v1615 = vmul.f32 1.0, %v1614
  %v1616 = vmul.f32 %v1588, %v1609
  %v1617 = vmul.f32 %v1589, %v1611
  %v1618 = vmul.f32 %v1590, %v1613
  %v1619 = vmul.f32 %v1591, %v1615
  %v1620 = vld [vmem:[%s5] sm:$0xff]
  %v1621 = vld [vmem:[%s5 + $0x8] sm:$0xff]
  %v1622 = vld [vmem:[%s5 + $0x10] sm:$0xff]
  %v1623 = vld [vmem:[%s5 + $0x18] sm:$0xff]
  %v1624 = vld [vmem:[%s5 + $0x20] sm:$0xff]
  %v1625 = vld [vmem:[%s6] sm:$0xff]
  %v1626 = vld [vmem:[%s6 + $0x8] sm:$0xff]
  %v1627 = vld [vmem:[%s6 + $0x10] sm:$0xff]
  %v1628 = vld [vmem:[%s6 + $0x18] sm:$0xff]
  %v1629 = vld [vmem:[%s6 + $0x20] sm:$0xff]
  %1631 = vset.pattern.permute.xlu0 0
  %1632 = vperm.xlu0 %1631, %v1625
  %v1633 = vpop.permute.xlu0 %1632
  %1636 = vset.pattern.permute.xlu0 0
  %1637 = vperm.xlu0 %1636, %v1626
  %v1638 = vpop.permute.xlu0 %1637
  %1641 = vset.pattern.permute.xlu0 0
  %1642 = vperm.xlu0 %1641, %v1627
  %v1643 = vpop.permute.xlu0 %1642
  %1646 = vset.pattern.permute.xlu0 0
  %1647 = vperm.xlu0 %1646, %v1628
  %v1648 = vpop.permute.xlu0 %1647
  %1651 = vset.pattern.permute.xlu0 0
  %1652 = vperm.xlu0 %1651, %v1629
  %v1653 = vpop.permute.xlu0 %1652
  %v1656 = vsel %vm961, %v1620, 0
  %v1659 = vsel %vm961, %v1621, 0
  %v1662 = vsel %vm961, %v1622, 0
  %v1665 = vsel %vm961, %v1623, 0
  %v1668 = vsel %vm961, %v1624, 0
  %1670 = vmatprep.subr.mxu0 0.0
  %v1671 = vand.u32 %v1616, 4294901760
  %1672 = vmatpush1.msra.mxu0 %v1671
  %1673 = vmatprep.subr.mxu0 0.0
  %v1674 = vand.u32 %v1617, 4294901760
  %1675 = vmatpush1.msra.mxu0 %v1674
  %1676 = vmatprep.subr.mxu0 0.0
  %v1677 = vand.u32 %v1618, 4294901760
  %1678 = vmatpush1.msra.mxu0 %v1677
  %1679 = vmatprep.subr.mxu0 0.0
  %v1680 = vand.u32 %v1619, 4294901760
  %1681 = vmatpush1.msra.mxu0 %v1680
  %1682 = vmatprep.subr.mxu0 0.0
  %1683 = vmatpush1.msra.mxu0 0.0
  %1684 = vmatprep.subr.mxu0 0.0
  %1685 = vmatpush1.msra.mxu0 0.0
  %1686 = vmatprep.subr.mxu0 0.0
  %1687 = vmatpush1.msra.mxu0 0.0
  %1688 = vmatprep.subr.mxu0 0.0
  %1689 = vmatpush1.msra.mxu0 0.0
  %1690 = vmatprep.subr.mxu0 0.0
  %1691 = vmatpush1.msra.mxu0 0.0
  %1692 = vmatprep.subr.mxu0 0.0
  %1693 = vmatpush1.msra.mxu0 0.0
  %1694 = vmatprep.subr.mxu0 0.0
  %1695 = vmatpush1.msra.mxu0 0.0
  %1696 = vmatprep.subr.mxu0 0.0
  %1697 = vmatpush1.msra.mxu0 0.0
  %1698 = vmatprep.subr.mxu0 0.0
  %1699 = vmatpush1.msra.mxu0 0.0
  %1700 = vmatprep.subr.mxu0 0.0
  %1701 = vmatpush1.msra.mxu0 0.0
  %1702 = vmatprep.subr.mxu0 0.0
  %1703 = vmatpush1.msra.mxu0 0.0
  %1704 = vmatprep.subr.mxu0 0.0
  %1705 = vmatpush1.msra.mxu0 0.0
  %1706 = vmatprep.subr.mxu0 0.0
  %1707 = vmatpush1.msra.mxu0 0.0
  %1708 = vmatprep.subr.mxu0 0.0
  %1709 = vmatpush1.msra.mxu0 0.0
  %1710 = vmatprep.subr.mxu0 0.0
  %1711 = vmatpush1.msra.mxu0 0.0
  %1712 = vmatprep.subr.mxu0 0.0
  %1713 = vmatpush1.msra.mxu0 0.0
  %1714 = vmatprep.subr.mxu0 0.0
  %1715 = vmatpush1.msra.mxu0 0.0
  %1716 = vmatprep.subr.mxu0 0.0
  %1717 = vmatpush1.msra.mxu0 0.0
  %1718 = vmatprep.subr.mxu0 0.0
  %1719 = vmatpush1.msra.mxu0 0.0
  %1720 = vmatprep.subr.mxu0 0.0
  %1721 = vmatpush1.msra.mxu0 0.0
  %1722 = vmatprep.subr.mxu0 0.0
  %1723 = vmatpush1.msra.mxu0 0.0
  %1724 = vmatprep.subr.mxu0 0.0
  %1725 = vmatpush1.msra.mxu0 0.0
  %1726 = vmatprep.subr.mxu0 0.0
  %1727 = vmatpush1.msra.mxu0 0.0
  %1728 = vmatprep.subr.mxu0 0.0
  %1729 = vmatpush1.msra.mxu0 0.0
  %1730 = vmatprep.subr.mxu0 0.0
  %1731 = vmatpush1.msra.mxu0 0.0
  %1732 = vmatprep.subr.mxu0 0.0
  %1733 = vmatpush1.msra.mxu0 0.0
  %1734 = vmatprep.subr.mxu0 0.0
  %1735 = vmatpush1.msra.mxu0 0.0
  %1736 = vmatprep.subr.mxu0 0.0
  %1737 = vmatpush1.msra.mxu0 0.0
  %1738 = vmatprep.mubr.f32.mxu0 0.0
  %v1739 = vand.u32 %v1656, 4294901760
  %v1740 = vsub.f32 %v1656, %v1739
  %v1741 = vand.u32 %v1740, 4294901760
  %v1742 = vsub.f32 %v1740, %v1741
  %v1743 = vand.u32 %v1742, 4294901760
  %1744 = vmatmul.mubr.f32.gmra.mrb[0].mxu0 %v1743
  %v1745 = vpop.f32.mrb[0].mxu0
  %v1746 = vadd.f32 %v1633, %v1745
  %v1747 = vpop.f32.mrb[0].mxu0
  %1748 = vmatprep.mubr.f32.mxu0 0.0
  %v1749 = vand.u32 %v1659, 4294901760
  %v1750 = vsub.f32 %v1659, %v1749
  %v1751 = vand.u32 %v1750, 4294901760
  %v1752 = vsub.f32 %v1750, %v1751
  %v1753 = vand.u32 %v1752, 4294901760
  %1754 = vmatmul.mubr.f32.gmra.mrb[0].mxu0 %v1753
  %v1755 = vpop.f32.mrb[0].mxu0
  %v1756 = vadd.f32 %v1638, %v1755
  %v1757 = vpop.f32.mrb[0].mxu0
  %1758 = vmatprep.mubr.f32.mxu0 0.0
  %v1759 = vand.u32 %v1662, 4294901760
  %v1760 = vsub.f32 %v1662, %v1759
  %v1761 = vand.u32 %v1760, 4294901760
  %v1762 = vsub.f32 %v1760, %v1761
  %v1763 = vand.u32 %v1762, 4294901760
  %1764 = vmatmul.mubr.f32.gmra.mrb[0].mxu0 %v1763
  %v1765 = vpop.f32.mrb[0].mxu0
  %v1766 = vadd.f32 %v1643, %v1765
  %v1767 = vpop.f32.mrb[0].mxu0
  %1768 = vmatprep.mubr.f32.mxu0 0.0
  %v1769 = vand.u32 %v1665, 4294901760
  %v1770 = vsub.f32 %v1665, %v1769
  %v1771 = vand.u32 %v1770, 4294901760
  %v1772 = vsub.f32 %v1770, %v1771
  %v1773 = vand.u32 %v1772, 4294901760
  %1774 = vmatmul.mubr.f32.gmra.mrb[0].mxu0 %v1773
  %v1775 = vpop.f32.mrb[0].mxu0
  %v1776 = vadd.f32 %v1648, %v1775
  %v1777 = vpop.f32.mrb[0].mxu0
  %1778 = vmatprep.mubr.f32.mxu0 0.0
  %v1779 = vand.u32 %v1668, 4294901760
  %v1780 = vsub.f32 %v1668, %v1779
  %v1781 = vand.u32 %v1780, 4294901760
  %v1782 = vsub.f32 %v1780, %v1781
  %v1783 = vand.u32 %v1782, 4294901760
  %1784 = vmatmul.mubr.f32.gmra.mrb[0].mxu0 %v1783
  %v1785 = vpop.f32.mrb[0].mxu0
  %v1786 = vadd.f32 %v1653, %v1785
  %v1787 = vpop.f32.mrb[0].mxu0
  %1788 = vdwg.mxu0
  %1789 = vmatprep.subr.mxu0 0.0
  %v1790 = vand.u32 %v1616, 4294901760
  %v1791 = vsub.f32 %v1616, %v1790
  %v1792 = vand.u32 %v1791, 4294901760
  %v1793 = vsub.f32 %v1791, %v1792
  %v1794 = vand.u32 %v1793, 4294901760
  %1795 = vmatpush1.msra.mxu0 %v1794
  %1796 = vmatprep.subr.mxu0 0.0
  %v1797 = vand.u32 %v1617, 4294901760
  %v1798 = vsub.f32 %v1617, %v1797
  %v1799 = vand.u32 %v1798, 4294901760
  %v1800 = vsub.f32 %v1798, %v1799
  %v1801 = vand.u32 %v1800, 4294901760
  %1802 = vmatpush1.msra.mxu0 %v1801
  %1803 = vmatprep.subr.mxu0 0.0
  %v1804 = vand.u32 %v1618, 4294901760
  %v1805 = vsub.f32 %v1618, %v1804
  %v1806 = vand.u32 %v1805, 4294901760
  %v1807 = vsub.f32 %v1805, %v1806
  %v1808 = vand.u32 %v1807, 4294901760
  %1809 = vmatpush1.msra.mxu0 %v1808
  %1810 = vmatprep.subr.mxu0 0.0
  %v1811 = vand.u32 %v1619, 4294901760
  %v1812 = vsub.f32 %v1619, %v1811
  %v1813 = vand.u32 %v1812, 4294901760
  %v1814 = vsub.f32 %v1812, %v1813
  %v1815 = vand.u32 %v1814, 4294901760
  %1816 = vmatpush1.msra.mxu0 %v1815
  %1817 = vmatprep.subr.mxu0 0.0
  %1818 = vmatpush1.msra.mxu0 0.0
  %1819 = vmatprep.subr.mxu0 0.0
  %1820 = vmatpush1.msra.mxu0 0.0
  %1821 = vmatprep.subr.mxu0 0.0
  %1822 = vmatpush1.msra.mxu0 0.0
  %1823 = vmatprep.subr.mxu0 0.0
  %1824 = vmatpush1.msra.mxu0 0.0
  %1825 = vmatprep.subr.mxu0 0.0
  %1826 = vmatpush1.msra.mxu0 0.0
  %1827 = vmatprep.subr.mxu0 0.0
  %1828 = vmatpush1.msra.mxu0 0.0
  %1829 = vmatprep.subr.mxu0 0.0
  %1830 = vmatpush1.msra.mxu0 0.0
  %1831 = vmatprep.subr.mxu0 0.0
  %1832 = vmatpush1.msra.mxu0 0.0
  %1833 = vmatprep.subr.mxu0 0.0
  %1834 = vmatpush1.msra.mxu0 0.0
  %1835 = vmatprep.subr.mxu0 0.0
  %1836 = vmatpush1.msra.mxu0 0.0
  %1837 = vmatprep.subr.mxu0 0.0
  %1838 = vmatpush1.msra.mxu0 0.0
  %1839 = vmatprep.subr.mxu0 0.0
  %1840 = vmatpush1.msra.mxu0 0.0
  %1841 = vmatprep.subr.mxu0 0.0
  %1842 = vmatpush1.msra.mxu0 0.0
  %1843 = vmatprep.subr.mxu0 0.0
  %1844 = vmatpush1.msra.mxu0 0.0
  %1845 = vmatprep.subr.mxu0 0.0
  %1846 = vmatpush1.msra.mxu0 0.0
  %1847 = vmatprep.subr.mxu0 0.0
  %1848 = vmatpush1.msra.mxu0 0.0
  %1849 = vmatprep.subr.mxu0 0.0
  %1850 = vmatpush1.msra.mxu0 0.0
  %1851 = vmatprep.subr.mxu0 0.0
  %1852 = vmatpush1.msra.mxu0 0.0
  %1853 = vmatprep.subr.mxu0 0.0
  %1854 = vmatpush1.msra.mxu0 0.0
  %1855 = vmatprep.subr.mxu0 0.0
  %1856 = vmatpush1.msra.mxu0 0.0
  %1857 = vmatprep.subr.mxu0 0.0
  %1858 = vmatpush1.msra.mxu0 0.0
  %1859 = vmatprep.subr.mxu0 0.0
  %1860 = vmatpush1.msra.mxu0 0.0
  %1861 = vmatprep.subr.mxu0 0.0
  %1862 = vmatpush1.msra.mxu0 0.0
  %1863 = vmatprep.subr.mxu0 0.0
  %1864 = vmatpush1.msra.mxu0 0.0
  %1865 = vmatprep.subr.mxu0 0.0
  %1866 = vmatpush1.msra.mxu0 0.0
  %1867 = vmatprep.subr.mxu0 0.0
  %1868 = vmatpush1.msra.mxu0 0.0
  %1869 = vmatprep.subr.mxu0 0.0
  %1870 = vmatpush1.msra.mxu0 0.0
  %1871 = vmatprep.subr.mxu0 0.0
  %1872 = vmatpush1.msra.mxu0 0.0
  %1873 = vmatprep.mubr.f32.mxu0 0.0
  %v1874 = vand.u32 %v1656, 4294901760
  %1875 = vmatmul.mubr.f32.gmra.mrb[0].mxu0 %v1874
  %v1876 = vpop.f32.mrb[0].mxu0
  %v1877 = vadd.f32 %v1746, %v1876
  %v1878 = vpop.f32.mrb[0].mxu0
  %1879 = vmatprep.mubr.f32.mxu0 0.0
  %v1880 = vand.u32 %v1659, 4294901760
  %1881 = vmatmul.mubr.f32.gmra.mrb[0].mxu0 %v1880
  %v1882 = vpop.f32.mrb[0].mxu0
  %v1883 = vadd.f32 %v1756, %v1882
  %v1884 = vpop.f32.mrb[0].mxu0
  %1885 = vmatprep.mubr.f32.mxu0 0.0
  %v1886 = vand.u32 %v1662, 4294901760
  %1887 = vmatmul.mubr.f32.gmra.mrb[0].mxu0 %v1886
  %v1888 = vpop.f32.mrb[0].mxu0
  %v1889 = vadd.f32 %v1766, %v1888
  %v1890 = vpop.f32.mrb[0].mxu0
  %1891 = vmatprep.mubr.f32.mxu0 0.0
  %v1892 = vand.u32 %v1665, 4294901760
  %1893 = vmatmul.mubr.f32.gmra.mrb[0].mxu0 %v1892
  %v1894 = vpop.f32.mrb[0].mxu0
  %v1895 = vadd.f32 %v1776, %v1894
  %v1896 = vpop.f32.mrb[0].mxu0
  %1897 = vmatprep.mubr.f32.mxu0 0.0
  %v1898 = vand.u32 %v1668, 4294901760
  %1899 = vmatmul.mubr.f32.gmra.mrb[0].mxu0 %v1898
  %v1900 = vpop.f32.mrb[0].mxu0
  %v1901 = vadd.f32 %v1786, %v1900
  %v1902 = vpop.f32.mrb[0].mxu0
  %1903 = vdwg.mxu0
  %1904 = vmatprep.subr.mxu0 0.0
  %v1905 = vand.u32 %v1616, 4294901760
  %v1906 = vsub.f32 %v1616, %v1905
  %1907 = vmatpush1.msra.mxu0 %v1906
  %1908 = vmatprep.subr.mxu0 0.0
  %v1909 = vand.u32 %v1617, 4294901760
  %v1910 = vsub.f32 %v1617, %v1909
  %1911 = vmatpush1.msra.mxu0 %v1910
  %1912 = vmatprep.subr.mxu0 0.0
  %v1913 = vand.u32 %v1618, 4294901760
  %v1914 = vsub.f32 %v1618, %v1913
  %1915 = vmatpush1.msra.mxu0 %v1914
  %1916 = vmatprep.subr.mxu0 0.0
  %v1917 = vand.u32 %v1619, 4294901760
  %v1918 = vsub.f32 %v1619, %v1917
  %1919 = vmatpush1.msra.mxu0 %v1918
  %1920 = vmatprep.subr.mxu0 0.0
  %1921 = vmatpush1.msra.mxu0 0.0
  %1922 = vmatprep.subr.mxu0 0.0
  %1923 = vmatpush1.msra.mxu0 0.0
  %1924 = vmatprep.subr.mxu0 0.0
  %1925 = vmatpush1.msra.mxu0 0.0
  %1926 = vmatprep.subr.mxu0 0.0
  %1927 = vmatpush1.msra.mxu0 0.0
  %1928 = vmatprep.subr.mxu0 0.0
  %1929 = vmatpush1.msra.mxu0 0.0
  %1930 = vmatprep.subr.mxu0 0.0
  %1931 = vmatpush1.msra.mxu0 0.0
  %1932 = vmatprep.subr.mxu0 0.0
  %1933 = vmatpush1.msra.mxu0 0.0
  %1934 = vmatprep.subr.mxu0 0.0
  %1935 = vmatpush1.msra.mxu0 0.0
  %1936 = vmatprep.subr.mxu0 0.0
  %1937 = vmatpush1.msra.mxu0 0.0
  %1938 = vmatprep.subr.mxu0 0.0
  %1939 = vmatpush1.msra.mxu0 0.0
  %1940 = vmatprep.subr.mxu0 0.0
  %1941 = vmatpush1.msra.mxu0 0.0
  %1942 = vmatprep.subr.mxu0 0.0
  %1943 = vmatpush1.msra.mxu0 0.0
  %1944 = vmatprep.subr.mxu0 0.0
  %1945 = vmatpush1.msra.mxu0 0.0
  %1946 = vmatprep.subr.mxu0 0.0
  %1947 = vmatpush1.msra.mxu0 0.0
  %1948 = vmatprep.subr.mxu0 0.0
  %1949 = vmatpush1.msra.mxu0 0.0
  %1950 = vmatprep.subr.mxu0 0.0
  %1951 = vmatpush1.msra.mxu0 0.0
  %1952 = vmatprep.subr.mxu0 0.0
  %1953 = vmatpush1.msra.mxu0 0.0
  %1954 = vmatprep.subr.mxu0 0.0
  %1955 = vmatpush1.msra.mxu0 0.0
  %1956 = vmatprep.subr.mxu0 0.0
  %1957 = vmatpush1.msra.mxu0 0.0
  %1958 = vmatprep.subr.mxu0 0.0
  %1959 = vmatpush1.msra.mxu0 0.0
  %1960 = vmatprep.subr.mxu0 0.0
  %1961 = vmatpush1.msra.mxu0 0.0
  %1962 = vmatprep.subr.mxu0 0.0
  %1963 = vmatpush1.msra.mxu0 0.0
  %1964 = vmatprep.subr.mxu0 0.0
  %1965 = vmatpush1.msra.mxu0 0.0
  %1966 = vmatprep.subr.mxu0 0.0
  %1967 = vmatpush1.msra.mxu0 0.0
  %1968 = vmatprep.subr.mxu0 0.0
  %1969 = vmatpush1.msra.mxu0 0.0
  %1970 = vmatprep.subr.mxu0 0.0
  %1971 = vmatpush1.msra.mxu0 0.0
  %1972 = vmatprep.subr.mxu0 0.0
  %1973 = vmatpush1.msra.mxu0 0.0
  %1974 = vmatprep.subr.mxu0 0.0
  %1975 = vmatpush1.msra.mxu0 0.0
  %1976 = vmatprep.mubr.f32.mxu0 0.0
  %v1977 = vand.u32 %v1656, 4294901760
  %v1978 = vsub.f32 %v1656, %v1977
  %1979 = vmatmul.mubr.f32.gmra.mrb[0].mxu0 %v1978
  %v1980 = vpop.f32.mrb[0].mxu0
  %v1981 = vadd.f32 %v1877, %v1980
  %v1982 = vpop.f32.mrb[0].mxu0
  %1983 = vmatprep.mubr.f32.mxu0 0.0
  %v1984 = vand.u32 %v1659, 4294901760
  %v1985 = vsub.f32 %v1659, %v1984
  %1986 = vmatmul.mubr.f32.gmra.mrb[0].mxu0 %v1985
  %v1987 = vpop.f32.mrb[0].mxu0
  %v1988 = vadd.f32 %v1883, %v1987
  %v1989 = vpop.f32.mrb[0].mxu0
  %1990 = vmatprep.mubr.f32.mxu0 0.0
  %v1991 = vand.u32 %v1662, 4294901760
  %v1992 = vsub.f32 %v1662, %v1991
  %1993 = vmatmul.mubr.f32.gmra.mrb[0].mxu0 %v1992
  %v1994 = vpop.f32.mrb[0].mxu0
  %v1995 = vadd.f32 %v1889, %v1994
  %v1996 = vpop.f32.mrb[0].mxu0
  %1997 = vmatprep.mubr.f32.mxu0 0.0
  %v1998 = vand.u32 %v1665, 4294901760
  %v1999 = vsub.f32 %v1665, %v1998
  %2000 = vmatmul.mubr.f32.gmra.mrb[0].mxu0 %v1999
  %v2001 = vpop.f32.mrb[0].mxu0
  %v2002 = vadd.f32 %v1895, %v2001
  %v2003 = vpop.f32.mrb[0].mxu0
  %2004 = vmatprep.mubr.f32.mxu0 0.0
  %v2005 = vand.u32 %v1668, 4294901760
  %v2006 = vsub.f32 %v1668, %v2005
  %2007 = vmatmul.mubr.f32.gmra.mrb[0].mxu0 %v2006
  %v2008 = vpop.f32.mrb[0].mxu0
  %v2009 = vadd.f32 %v1901, %v2008
  %v2010 = vpop.f32.mrb[0].mxu0
  %2011 = vdwg.mxu0
  %2012 = vmatprep.subr.mxu0 0.0
  %v2013 = vand.u32 %v1616, 4294901760
  %2014 = vmatpush1.msra.mxu0 %v2013
  %2015 = vmatprep.subr.mxu0 0.0
  %v2016 = vand.u32 %v1617, 4294901760
  %2017 = vmatpush1.msra.mxu0 %v2016
  %2018 = vmatprep.subr.mxu0 0.0
  %v2019 = vand.u32 %v1618, 4294901760
  %2020 = vmatpush1.msra.mxu0 %v2019
  %2021 = vmatprep.subr.mxu0 0.0
  %v2022 = vand.u32 %v1619, 4294901760
  %2023 = vmatpush1.msra.mxu0 %v2022
  %2024 = vmatprep.subr.mxu0 0.0
  %2025 = vmatpush1.msra.mxu0 0.0
  %2026 = vmatprep.subr.mxu0 0.0
  %2027 = vmatpush1.msra.mxu0 0.0
  %2028 = vmatprep.subr.mxu0 0.0
  %2029 = vmatpush1.msra.mxu0 0.0
  %2030 = vmatprep.subr.mxu0 0.0
  %2031 = vmatpush1.msra.mxu0 0.0
  %2032 = vmatprep.subr.mxu0 0.0
  %2033 = vmatpush1.msra.mxu0 0.0
  %2034 = vmatprep.subr.mxu0 0.0
  %2035 = vmatpush1.msra.mxu0 0.0
  %2036 = vmatprep.subr.mxu0 0.0
  %2037 = vmatpush1.msra.mxu0 0.0
  %2038 = vmatprep.subr.mxu0 0.0
  %2039 = vmatpush1.msra.mxu0 0.0
  %2040 = vmatprep.subr.mxu0 0.0
  %2041 = vmatpush1.msra.mxu0 0.0
  %2042 = vmatprep.subr.mxu0 0.0
  %2043 = vmatpush1.msra.mxu0 0.0
  %2044 = vmatprep.subr.mxu0 0.0
  %2045 = vmatpush1.msra.mxu0 0.0
  %2046 = vmatprep.subr.mxu0 0.0
  %2047 = vmatpush1.msra.mxu0 0.0
  %2048 = vmatprep.subr.mxu0 0.0
  %2049 = vmatpush1.msra.mxu0 0.0
  %2050 = vmatprep.subr.mxu0 0.0
  %2051 = vmatpush1.msra.mxu0 0.0
  %2052 = vmatprep.subr.mxu0 0.0
  %2053 = vmatpush1.msra.mxu0 0.0
  %2054 = vmatprep.subr.mxu0 0.0
  %2055 = vmatpush1.msra.mxu0 0.0
  %2056 = vmatprep.subr.mxu0 0.0
  %2057 = vmatpush1.msra.mxu0 0.0
  %2058 = vmatprep.subr.mxu0 0.0
  %2059 = vmatpush1.msra.mxu0 0.0
  %2060 = vmatprep.subr.mxu0 0.0
  %2061 = vmatpush1.msra.mxu0 0.0
  %2062 = vmatprep.subr.mxu0 0.0
  %2063 = vmatpush1.msra.mxu0 0.0
  %2064 = vmatprep.subr.mxu0 0.0
  %2065 = vmatpush1.msra.mxu0 0.0
  %2066 = vmatprep.subr.mxu0 0.0
  %2067 = vmatpush1.msra.mxu0 0.0
  %2068 = vmatprep.subr.mxu0 0.0
  %2069 = vmatpush1.msra.mxu0 0.0
  %2070 = vmatprep.subr.mxu0 0.0
  %2071 = vmatpush1.msra.mxu0 0.0
  %2072 = vmatprep.subr.mxu0 0.0
  %2073 = vmatpush1.msra.mxu0 0.0
  %2074 = vmatprep.subr.mxu0 0.0
  %2075 = vmatpush1.msra.mxu0 0.0
  %2076 = vmatprep.subr.mxu0 0.0
  %2077 = vmatpush1.msra.mxu0 0.0
  %2078 = vmatprep.subr.mxu0 0.0
  %2079 = vmatpush1.msra.mxu0 0.0
  %2080 = vmatprep.mubr.f32.mxu0 0.0
  %v2081 = vand.u32 %v1656, 4294901760
  %v2082 = vsub.f32 %v1656, %v2081
  %v2083 = vand.u32 %v2082, 4294901760
  %2084 = vmatmul.mubr.f32.gmra.mrb[0].mxu0 %v2083
  %v2085 = vpop.f32.mrb[0].mxu0
  %v2086 = vadd.f32 %v1981, %v2085
  %v2087 = vpop.f32.mrb[0].mxu0
  %2088 = vmatprep.mubr.f32.mxu0 0.0
  %v2089 = vand.u32 %v1659, 4294901760
  %v2090 = vsub.f32 %v1659, %v2089
  %v2091 = vand.u32 %v2090, 4294901760
  %2092 = vmatmul.mubr.f32.gmra.mrb[0].mxu0 %v2091
  %v2093 = vpop.f32.mrb[0].mxu0
  %v2094 = vadd.f32 %v1988, %v2093
  %v2095 = vpop.f32.mrb[0].mxu0
  %2096 = vmatprep.mubr.f32.mxu0 0.0
  %v2097 = vand.u32 %v1662, 4294901760
  %v2098 = vsub.f32 %v1662, %v2097
  %v2099 = vand.u32 %v2098, 4294901760
  %2100 = vmatmul.mubr.f32.gmra.mrb[0].mxu0 %v2099
  %v2101 = vpop.f32.mrb[0].mxu0
  %v2102 = vadd.f32 %v1995, %v2101
  %v2103 = vpop.f32.mrb[0].mxu0
  %2104 = vmatprep.mubr.f32.mxu0 0.0
  %v2105 = vand.u32 %v1665, 4294901760
  %v2106 = vsub.f32 %v1665, %v2105
  %v2107 = vand.u32 %v2106, 4294901760
  %2108 = vmatmul.mubr.f32.gmra.mrb[0].mxu0 %v2107
  %v2109 = vpop.f32.mrb[0].mxu0
  %v2110 = vadd.f32 %v2002, %v2109
  %v2111 = vpop.f32.mrb[0].mxu0
  %2112 = vmatprep.mubr.f32.mxu0 0.0
  %v2113 = vand.u32 %v1668, 4294901760
  %v2114 = vsub.f32 %v1668, %v2113
  %v2115 = vand.u32 %v2114, 4294901760
  %2116 = vmatmul.mubr.f32.gmra.mrb[0].mxu0 %v2115
  %v2117 = vpop.f32.mrb[0].mxu0
  %v2118 = vadd.f32 %v2009, %v2117
  %v2119 = vpop.f32.mrb[0].mxu0
  %2120 = vdwg.mxu0
  %2121 = vmatprep.subr.mxu0 0.0
  %v2122 = vand.u32 %v1616, 4294901760
  %v2123 = vsub.f32 %v1616, %v2122
  %v2124 = vand.u32 %v2123, 4294901760
  %2125 = vmatpush1.msra.mxu0 %v2124
  %2126 = vmatprep.subr.mxu0 0.0
  %v2127 = vand.u32 %v1617, 4294901760
  %v2128 = vsub.f32 %v1617, %v2127
  %v2129 = vand.u32 %v2128, 4294901760
  %2130 = vmatpush1.msra.mxu0 %v2129
  %2131 = vmatprep.subr.mxu0 0.0
  %v2132 = vand.u32 %v1618, 4294901760
  %v2133 = vsub.f32 %v1618, %v2132
  %v2134 = vand.u32 %v2133, 4294901760
  %2135 = vmatpush1.msra.mxu0 %v2134
  %2136 = vmatprep.subr.mxu0 0.0
  %v2137 = vand.u32 %v1619, 4294901760
  %v2138 = vsub.f32 %v1619, %v2137
  %v2139 = vand.u32 %v2138, 4294901760
  %2140 = vmatpush1.msra.mxu0 %v2139
  %2141 = vmatprep.subr.mxu0 0.0
  %2142 = vmatpush1.msra.mxu0 0.0
  %2143 = vmatprep.subr.mxu0 0.0
  %2144 = vmatpush1.msra.mxu0 0.0
  %2145 = vmatprep.subr.mxu0 0.0
  %2146 = vmatpush1.msra.mxu0 0.0
  %2147 = vmatprep.subr.mxu0 0.0
  %2148 = vmatpush1.msra.mxu0 0.0
  %2149 = vmatprep.subr.mxu0 0.0
  %2150 = vmatpush1.msra.mxu0 0.0
  %2151 = vmatprep.subr.mxu0 0.0
  %2152 = vmatpush1.msra.mxu0 0.0
  %2153 = vmatprep.subr.mxu0 0.0
  %2154 = vmatpush1.msra.mxu0 0.0
  %2155 = vmatprep.subr.mxu0 0.0
  %2156 = vmatpush1.msra.mxu0 0.0
  %2157 = vmatprep.subr.mxu0 0.0
  %2158 = vmatpush1.msra.mxu0 0.0
  %2159 = vmatprep.subr.mxu0 0.0
  %2160 = vmatpush1.msra.mxu0 0.0
  %2161 = vmatprep.subr.mxu0 0.0
  %2162 = vmatpush1.msra.mxu0 0.0
  %2163 = vmatprep.subr.mxu0 0.0
  %2164 = vmatpush1.msra.mxu0 0.0
  %2165 = vmatprep.subr.mxu0 0.0
  %2166 = vmatpush1.msra.mxu0 0.0
  %2167 = vmatprep.subr.mxu0 0.0
  %2168 = vmatpush1.msra.mxu0 0.0
  %2169 = vmatprep.subr.mxu0 0.0
  %2170 = vmatpush1.msra.mxu0 0.0
  %2171 = vmatprep.subr.mxu0 0.0
  %2172 = vmatpush1.msra.mxu0 0.0
  %2173 = vmatprep.subr.mxu0 0.0
  %2174 = vmatpush1.msra.mxu0 0.0
  %2175 = vmatprep.subr.mxu0 0.0
  %2176 = vmatpush1.msra.mxu0 0.0
  %2177 = vmatprep.subr.mxu0 0.0
  %2178 = vmatpush1.msra.mxu0 0.0
  %2179 = vmatprep.subr.mxu0 0.0
  %2180 = vmatpush1.msra.mxu0 0.0
  %2181 = vmatprep.subr.mxu0 0.0
  %2182 = vmatpush1.msra.mxu0 0.0
  %2183 = vmatprep.subr.mxu0 0.0
  %2184 = vmatpush1.msra.mxu0 0.0
  %2185 = vmatprep.subr.mxu0 0.0
  %2186 = vmatpush1.msra.mxu0 0.0
  %2187 = vmatprep.subr.mxu0 0.0
  %2188 = vmatpush1.msra.mxu0 0.0
  %2189 = vmatprep.subr.mxu0 0.0
  %2190 = vmatpush1.msra.mxu0 0.0
  %2191 = vmatprep.subr.mxu0 0.0
  %2192 = vmatpush1.msra.mxu0 0.0
  %2193 = vmatprep.subr.mxu0 0.0
  %2194 = vmatpush1.msra.mxu0 0.0
  %2195 = vmatprep.subr.mxu0 0.0
  %2196 = vmatpush1.msra.mxu0 0.0
  %2197 = vmatprep.mubr.f32.mxu0 0.0
  %v2198 = vand.u32 %v1656, 4294901760
  %2199 = vmatmul.mubr.f32.gmra.mrb[0].mxu0 %v2198
  %v2200 = vpop.f32.mrb[0].mxu0
  %v2201 = vadd.f32 %v2086, %v2200
  %v2202 = vpop.f32.mrb[0].mxu0
  %2203 = vmatprep.mubr.f32.mxu0 0.0
  %v2204 = vand.u32 %v1659, 4294901760
  %2205 = vmatmul.mubr.f32.gmra.mrb[0].mxu0 %v2204
  %v2206 = vpop.f32.mrb[0].mxu0
  %v2207 = vadd.f32 %v2094, %v2206
  %v2208 = vpop.f32.mrb[0].mxu0
  %2209 = vmatprep.mubr.f32.mxu0 0.0
  %v2210 = vand.u32 %v1662, 4294901760
  %2211 = vmatmul.mubr.f32.gmra.mrb[0].mxu0 %v2210
  %v2212 = vpop.f32.mrb[0].mxu0
  %v2213 = vadd.f32 %v2102, %v2212
  %v2214 = vpop.f32.mrb[0].mxu0
  %2215 = vmatprep.mubr.f32.mxu0 0.0
  %v2216 = vand.u32 %v1665, 4294901760
  %2217 = vmatmul.mubr.f32.gmra.mrb[0].mxu0 %v2216
  %v2218 = vpop.f32.mrb[0].mxu0
  %v2219 = vadd.f32 %v2110, %v2218
  %v2220 = vpop.f32.mrb[0].mxu0
  %2221 = vmatprep.mubr.f32.mxu0 0.0
  %v2222 = vand.u32 %v1668, 4294901760
  %2223 = vmatmul.mubr.f32.gmra.mrb[0].mxu0 %v2222
  %v2224 = vpop.f32.mrb[0].mxu0
  %v2225 = vadd.f32 %v2118, %v2224
  %v2226 = vpop.f32.mrb[0].mxu0
  %2227 = vdwg.mxu0
  %2228 = vmatprep.subr.mxu0 0.0
  %v2229 = vand.u32 %v1616, 4294901760
  %2230 = vmatpush1.msra.mxu0 %v2229
  %2231 = vmatprep.subr.mxu0 0.0
  %v2232 = vand.u32 %v1617, 4294901760
  %2233 = vmatpush1.msra.mxu0 %v2232
  %2234 = vmatprep.subr.mxu0 0.0
  %v2235 = vand.u32 %v1618, 4294901760
  %2236 = vmatpush1.msra.mxu0 %v2235
  %2237 = vmatprep.subr.mxu0 0.0
  %v2238 = vand.u32 %v1619, 4294901760
  %2239 = vmatpush1.msra.mxu0 %v2238
  %2240 = vmatprep.subr.mxu0 0.0
  %2241 = vmatpush1.msra.mxu0 0.0
  %2242 = vmatprep.subr.mxu0 0.0
  %2243 = vmatpush1.msra.mxu0 0.0
  %2244 = vmatprep.subr.mxu0 0.0
  %2245 = vmatpush1.msra.mxu0 0.0
  %2246 = vmatprep.subr.mxu0 0.0
  %2247 = vmatpush1.msra.mxu0 0.0
  %2248 = vmatprep.subr.mxu0 0.0
  %2249 = vmatpush1.msra.mxu0 0.0
  %2250 = vmatprep.subr.mxu0 0.0
  %2251 = vmatpush1.msra.mxu0 0.0
  %2252 = vmatprep.subr.mxu0 0.0
  %2253 = vmatpush1.msra.mxu0 0.0
  %2254 = vmatprep.subr.mxu0 0.0
  %2255 = vmatpush1.msra.mxu0 0.0
  %2256 = vmatprep.subr.mxu0 0.0
  %2257 = vmatpush1.msra.mxu0 0.0
  %2258 = vmatprep.subr.mxu0 0.0
  %2259 = vmatpush1.msra.mxu0 0.0
  %2260 = vmatprep.subr.mxu0 0.0
  %2261 = vmatpush1.msra.mxu0 0.0
  %2262 = vmatprep.subr.mxu0 0.0
  %2263 = vmatpush1.msra.mxu0 0.0
  %2264 = vmatprep.subr.mxu0 0.0
  %2265 = vmatpush1.msra.mxu0 0.0
  %2266 = vmatprep.subr.mxu0 0.0
  %2267 = vmatpush1.msra.mxu0 0.0
  %2268 = vmatprep.subr.mxu0 0.0
  %2269 = vmatpush1.msra.mxu0 0.0
  %2270 = vmatprep.subr.mxu0 0.0
  %2271 = vmatpush1.msra.mxu0 0.0
  %2272 = vmatprep.subr.mxu0 0.0
  %2273 = vmatpush1.msra.mxu0 0.0
  %2274 = vmatprep.subr.mxu0 0.0
  %2275 = vmatpush1.msra.mxu0 0.0
  %2276 = vmatprep.subr.mxu0 0.0
  %2277 = vmatpush1.msra.mxu0 0.0
  %2278 = vmatprep.subr.mxu0 0.0
  %2279 = vmatpush1.msra.mxu0 0.0
  %2280 = vmatprep.subr.mxu0 0.0
  %2281 = vmatpush1.msra.mxu0 0.0
  %2282 = vmatprep.subr.mxu0 0.0
  %2283 = vmatpush1.msra.mxu0 0.0
  %2284 = vmatprep.subr.mxu0 0.0
  %2285 = vmatpush1.msra.mxu0 0.0
  %2286 = vmatprep.subr.mxu0 0.0
  %2287 = vmatpush1.msra.mxu0 0.0
  %2288 = vmatprep.subr.mxu0 0.0
  %2289 = vmatpush1.msra.mxu0 0.0
  %2290 = vmatprep.subr.mxu0 0.0
  %2291 = vmatpush1.msra.mxu0 0.0
  %2292 = vmatprep.subr.mxu0 0.0
  %2293 = vmatpush1.msra.mxu0 0.0
  %2294 = vmatprep.subr.mxu0 0.0
  %2295 = vmatpush1.msra.mxu0 0.0
  %2296 = vmatprep.mubr.f32.mxu0 0.0
  %v2297 = vand.u32 %v1656, 4294901760
  %2298 = vmatmul.mubr.f32.gmra.mrb[0].mxu0 %v2297
  %v2299 = vpop.f32.mrb[0].mxu0
  %v2300 = vadd.f32 %v2201, %v2299
  %v2301 = vpop.f32.mrb[0].mxu0
  %2302 = vmatprep.mubr.f32.mxu0 0.0
  %v2303 = vand.u32 %v1659, 4294901760
  %2304 = vmatmul.mubr.f32.gmra.mrb[0].mxu0 %v2303
  %v2305 = vpop.f32.mrb[0].mxu0
  %v2306 = vadd.f32 %v2207, %v2305
  %v2307 = vpop.f32.mrb[0].mxu0
  %2308 = vmatprep.mubr.f32.mxu0 0.0
  %v2309 = vand.u32 %v1662, 4294901760
  %2310 = vmatmul.mubr.f32.gmra.mrb[0].mxu0 %v2309
  %v2311 = vpop.f32.mrb[0].mxu0
  %v2312 = vadd.f32 %v2213, %v2311
  %v2313 = vpop.f32.mrb[0].mxu0
  %2314 = vmatprep.mubr.f32.mxu0 0.0
  %v2315 = vand.u32 %v1665, 4294901760
  %2316 = vmatmul.mubr.f32.gmra.mrb[0].mxu0 %v2315
  %v2317 = vpop.f32.mrb[0].mxu0
  %v2318 = vadd.f32 %v2219, %v2317
  %v2319 = vpop.f32.mrb[0].mxu0
  %2320 = vmatprep.mubr.f32.mxu0 0.0
  %v2321 = vand.u32 %v1668, 4294901760
  %2322 = vmatmul.mubr.f32.gmra.mrb[0].mxu0 %v2321
  %v2323 = vpop.f32.mrb[0].mxu0
  %v2324 = vadd.f32 %v2225, %v2323
  %v2325 = vpop.f32.mrb[0].mxu0
  %2326 = vdwg.mxu0
  %v2327 = vtanh.pop %v2300
  %v2328 = vtanh.pop %v2306
  %v2329 = vtanh.pop %v2312
  %v2330 = vtanh.pop %v2318
  %v2331 = vtanh.pop %v2324
  %2332 = vst [vmem:[%s7] sm:$0xff] %v2327
  %2333 = vst [vmem:[%s7 + $0x8] sm:$0xff] %v2328
  %2334 = vst [vmem:[%s7 + $0x10] sm:$0xff] %v2329
  %2335 = vst [vmem:[%s7 + $0x18] sm:$0xff] %v2330
  %2336 = vst [vmem:[%s7 + $0x20] sm:$0xff] %v2331
  // Predicated region
  $region30: #{tpu_custom_call.1} parent=0 // pred_check
    _
  $region31: #{tpu_custom_call.1} parent=0 // pred_check_branch
    %2338 = sbr.rel (0) target = $region33
  $region32: #{tpu_custom_call.1} parent=0 // pred_region
    _
  $region33: #{tpu_custom_call.1} parent=0 // pred_fallthru
    _
  // Predicated region
  $region34: #{tpu_custom_call.1} parent=0 // pred_check
    _
  $region35: #{tpu_custom_call.1} parent=0 // pred_check_branch
    %2340 = sbr.rel (0) target = $region37
  $region36: #{tpu_custom_call.1} parent=0 // pred_region
    _
  $region37: #{tpu_custom_call.1} parent=0 // pred_fallthru
    _

</llo_original>
